<compile_context>
chip_gen: v5e
topology: v5e:2x2
jax: 0.10.0
libtpu: 0.0.40
codegen_flags: <defaults>
</compile_context>

<pallas_src>
import functools
import math

import jax
import jax.numpy as jnp
import numpy as np
from jax.experimental import pallas as pl
from jax.experimental.pallas import tpu as pltpu


def _maybe_clip(x, clip):
    if clip is None:
        return x
    return jnp.clip(x, clip[0], clip[1])


def _batch_block(batch, max_rows=128):
    """Batch tile: full batch when small, otherwise a multiple of 8 that divides batch."""
    if batch <= max_rows or batch % 8 != 0:
        return batch
    b = max_rows
    while batch % b:
        b -= 8
    return b


# --------------------------- 'matrix' mode kernel ---------------------------
# out[b,d] = sum_{i,j} m1[b,i] m2[b,j] W[i,j,d] + (m2 @ V)[b,d] + (m1 @ U)[b,d] + b[d]
# Grid = (batch tiles, d tiles, n reduction tiles); reduction axis is last / 'arbitrary'.
# Per step: one lane-dense (bB, bn*m) @ (bn*m, bd) MXU contraction of the pre-formed outer
# product z against a streamed slab of the flattened hyper-weight, plus the matching
# (bB, bn) @ (bn, bd) slab of U.  V and b are added exactly once at k == 0.
def _matrix_kernel(z_ref, m1_ref, m2_ref, w_ref, u_ref, v_ref, b_ref, o_ref, acc_ref):
    k = pl.program_id(2)

    @pl.when(k == 0)
    def _init():
        acc_ref[...] = (
            jnp.dot(m2_ref[...], v_ref[...], preferred_element_type=jnp.float32)
            + b_ref[...])

    acc_ref[...] += (
        jnp.dot(z_ref[...], w_ref[...], preferred_element_type=jnp.float32)
        + jnp.dot(m1_ref[...], u_ref[...], preferred_element_type=jnp.float32))

    @pl.when(k == pl.num_programs(2) - 1)
    def _finalize():
        o_ref[...] = acc_ref[...].astype(o_ref.dtype)


# --------------------------- 'vector' mode kernel ---------------------------
def _vector_kernel(m1_ref, m2_ref, wu_ref, vb_ref, o_ref, *, clip, m, mp):
    m1 = _maybe_clip(m1_ref[...], clip)          # clip in f32 (no bf16 VPU on v5e)
    m2 = _maybe_clip(m2_ref[...], clip)
    # One lane-dense matmul against fused [W | U]; [V | b] is the bias, so wprime and
    # bprime come out of a single MXU pass.  Halves sit at 128-aligned lane offsets.
    fused = jnp.dot(m1, wu_ref[...], preferred_element_type=jnp.float32) + vb_ref[...]
    wprime = fused[:, :m]
    bprime = fused[:, mp:mp + m]
    o_ref[...] = wprime * m2 + bprime


# --------------------------- 'scalar' mode kernel ---------------------------
def _scalar_kernel(m1_ref, m2_ref, w_ref, u_ref, v_ref, b_ref, o_ref, *, clip):
    m1 = _maybe_clip(m1_ref[...], clip)
    m2 = _maybe_clip(m2_ref[...], clip)
    # (n,1) matvecs would use a single MXU column; do VPU multiply + lane reduction instead.
    wprime = jnp.sum(m1 * w_ref[...], axis=-1, keepdims=True) + v_ref[...]   # (bB, 1)
    bprime = jnp.sum(m1 * u_ref[...], axis=-1, keepdims=True) + b_ref[...]   # (bB, 1)
    # _repeatHorizontally == broadcasting the (bB, 1) column across the m output columns.
    o_ref[...] = wprime * m2 + bprime


class BimodalInteractionFusion:
    """JAX/Pallas re-implementation of the PyTorch module's forward pass."""

    def __init__(self, input_dims, output_dim, output, flatten=False, clip=None,
                 grad_clip=None, flip=False, key=None,
                 compute_dtype=jnp.bfloat16, block_n=None, block_d=None):
        if key is None:
            key = jax.random.PRNGKey(0)
        self.input_dims = tuple(input_dims)
        self.output_dim = output_dim
        self.output = output
        self.flatten = flatten
        self.clip = clip
        self.flip = flip
        self.compute_dtype = np.dtype(compute_dtype)   # matmul-operand dtype (matrix mode)
        self.block_n = block_n                         # optional overrides for tiling
        self.block_d = block_d
        # TODO(synk): grad_clip only registers backward hooks in torch; no forward equivalent.

        n, m = self.input_dims
        kW, kU, kV, kb = jax.random.split(key, 4)
        if output == 'matrix':
            d = output_dim
            # f32 "master" parameters (xavier_normal_ fans: (n,m,d) -> fan_in=m*d, fan_out=n*d)
            self.W = jax.random.normal(kW, (n, m, d), jnp.float32) * math.sqrt(2.0 / (m * d + n * d))
            self.U = jax.random.normal(kU, (n, d), jnp.float32) * math.sqrt(2.0 / (n + d))
            self.V = jax.random.normal(kV, (m, d), jnp.float32) * math.sqrt(2.0 / (m + d))
            self.b = jax.random.normal(kb, (1, d), jnp.float32)
            # Kernel-layout copies, built ONCE (no per-call transpose/reshape of W in HBM).
            cd = self.compute_dtype
            self._Wf = self.W.reshape(n * m, d).astype(cd)     # row i*m + j == W[i, j, :]
            self._Uc = self.U.astype(cd)
            self._Vc = self.V.astype(cd)
        elif output == 'vector':
            self.W = jax.random.normal(kW, (n, m), jnp.float32) * math.sqrt(2.0 / (n + m))
            self.U = jax.random.normal(kU, (n, m), jnp.float32) * math.sqrt(2.0 / (n + m))
            self.V = jax.random.normal(kV, (1, m), jnp.float32)
            self.b = jax.random.normal(kb, (1, m), jnp.float32)
            # Lane-dense fused [W | U] (each half padded to a 128-lane multiple) and [V | b].
            mp = self._mp = ((m + 127) // 128) * 128
            wu = jnp.zeros((n, 2 * mp), jnp.float32)
            self._WU = wu.at[:, :m].set(self.W).at[:, mp:mp + m].set(self.U)
            vb = jnp.zeros((1, 2 * mp), jnp.float32)
            self._Vb = vb.at[:, :m].set(self.V).at[:, mp:mp + m].set(self.b)
        elif output == 'scalar':
            self.W = jax.random.normal(kW, (1, n), jnp.float32)
            self.U = jax.random.normal(kU, (1, n), jnp.float32)
            self.V = jax.random.normal(kV, (1, 1), jnp.float32)
            self.b = jax.random.normal(kb, (1, 1), jnp.float32)
        else:
            raise ValueError(f"unknown output mode {output!r}")

    # ----------------------------- tiling helpers -----------------------------
    def _matrix_blocks(self, batch):
        n, m = self.input_dims
        d = self.output_dim
        itemsize = self.compute_dtype.itemsize
        # Lane (output / MXU-N) block over d: whole d when small, else a 128-multiple divisor.
        if self.block_d is not None:
            bd = self.block_d
        elif d > 512 and d % 128 == 0:
            bd = 512
            while d % bd:
                bd -= 128
        else:
            bd = d
        assert d % bd == 0 and (bd == d or bd % 128 == 0)
        # Reduction block over n: each grid step streams a (bn*m, bd) slab of the flattened W.
        # ~4 MiB per slab -> ~8 MiB double-buffered; fits the default scoped VMEM limit on
        # v5e (16 MiB) and v6e/v7x (32 MiB) with plenty of headroom for v7x's 64 MiB physical.
        if self.block_n is not None:
            bn = self.block_n
        elif n % 128 == 0:
            budget = 4 * 1024 * 1024
            rows = max(128, budget // max(1, m * bd * itemsize))
            bn = min(n, (rows // 128) * 128)
            while n % bn:
                bn -= 128
        else:
            bn = n
        assert n % bn == 0 and (bn == n or bn % 128 == 0)
        return _batch_block(batch), bd, bn

    # ----------------------------- forward paths ------------------------------
    def _forward_matrix(self, m1, m2):
        batch = m1.shape[0]
        n, m = self.input_dims
        d = self.output_dim
        cd = self.compute_dtype
        if self.clip is not None:
            m1 = jnp.clip(m1, self.clip[0], self.clip[1])
            m2 = jnp.clip(m2, self.clip[0], self.clip[1])
        # z[b, i*m + j] = m1[b, i] * m2[b, j]: the rank-1 outer product that turns the
        # bilinear einsum pair into a single (B, n*m) @ (n*m, d) MXU contraction.
        # TODO(synk): fold this outer product + lane-collapse into the kernel once Mosaic
        # supports the (bB, bn, m) -> (bB, bn*m) reshape; for now it is one fused XLA
        # elementwise pass (clip + outer + bf16 cast), extra HBM traffic ~2B/d of W's bytes.
        z = (m1[:, :, None] * m2[:, None, :]).reshape(batch, n * m).astype(cd)
        m1c = m1.astype(cd)
        m2c = m2.astype(cd)

        bB, bd, bn = self._matrix_blocks(batch)
        grid = (batch // bB, d // bd, n // bn)
        bkm = bn * m

        flops = 2 * batch * (n * m * d + n * d + m * d)
        bytes_accessed = int(
            z.size * z.dtype.itemsize + m1c.size * m1c.dtype.itemsize
            + m2c.size * m2c.dtype.itemsize + self._Wf.size * self._Wf.dtype.itemsize
            + self._Uc.size * self._Uc.dtype.itemsize + self._Vc.size * self._Vc.dtype.itemsize
            + self.b.size * 4 + batch * d * 4)

        return pl.pallas_call(
            _matrix_kernel,
            out_shape=jax.ShapeDtypeStruct((batch, d), jnp.float32),
            grid=grid,
            in_specs=[
                pl.BlockSpec((bB, bkm), lambda b, j, k: (b, k)),   # z (outer product)
                pl.BlockSpec((bB, bn), lambda b, j, k: (b, k)),    # m1 (for the U term)
                pl.BlockSpec((bB, m), lambda b, j, k: (b, 0)),     # m2 (for the V term)
                # Streamed, double-buffered W slab.  (pipeline_mode=pl.Buffered(3) is a
                # candidate sweep on v7x if the DMA shows up exposed in a trace.)
                pl.BlockSpec((bkm, bd), lambda b, j, k: (k, j)),   # W flattened (n*m, d)
                pl.BlockSpec((bn, bd), lambda b, j, k: (k, j)),    # U
                pl.BlockSpec((m, bd), lambda b, j, k: (0, j)),     # V
                pl.BlockSpec((1, bd), lambda b, j, k: (0, j)),     # b
            ],
            out_specs=pl.BlockSpec((bB, bd), lambda b, j, k: (b, j)),
            scratch_shapes=[pltpu.VMEM((bB, bd), jnp.float32)],
            compiler_params=pltpu.CompilerParams(
                dimension_semantics=("parallel", "parallel", "arbitrary")),
            cost_estimate=pl.CostEstimate(flops=flops, transcendentals=0,
                                          bytes_accessed=bytes_accessed),
        )(z, m1c, m2c, self._Wf, self._Uc, self._Vc, self.b)

    def _forward_vector(self, m1, m2):
        batch = m1.shape[0]
        n, m = self.input_dims
        mp = self._mp
        bB = _batch_block(batch)
        kernel = functools.partial(_vector_kernel, clip=self.clip, m=m, mp=mp)
        return pl.pallas_call(
            kernel,
            out_shape=jax.ShapeDtypeStruct((batch, m), jnp.float32),
            grid=(batch // bB,),
            in_specs=[
                pl.BlockSpec((bB, n), lambda b: (b, 0)),
                pl.BlockSpec((bB, m), lambda b: (b, 0)),
                pl.BlockSpec((n, 2 * mp), lambda b: (0, 0)),
                pl.BlockSpec((1, 2 * mp), lambda b: (0, 0)),
            ],
            out_specs=pl.BlockSpec((bB, m), lambda b: (b, 0)),
            compiler_params=pltpu.CompilerParams(dimension_semantics=("parallel",)),
        )(m1, m2, self._WU, self._Vb)

    def _forward_scalar(self, m1, m2):
        batch = m1.shape[0]
        n, m = self.input_dims
        bB = _batch_block(batch)
        kernel = functools.partial(_scalar_kernel, clip=self.clip)
        return pl.pallas_call(
            kernel,
            out_shape=jax.ShapeDtypeStruct((batch, m), jnp.float32),
            grid=(batch // bB,),
            in_specs=[
                pl.BlockSpec((bB, n), lambda b: (b, 0)),
                pl.BlockSpec((bB, m), lambda b: (b, 0)),
                pl.BlockSpec((1, n), lambda b: (0, 0)),
                pl.BlockSpec((1, n), lambda b: (0, 0)),
                pl.BlockSpec((1, 1), lambda b: (0, 0)),
                pl.BlockSpec((1, 1), lambda b: (0, 0)),
            ],
            out_specs=pl.BlockSpec((bB, m), lambda b: (b, 0)),
            compiler_params=pltpu.CompilerParams(dimension_semantics=("parallel",)),
        )(m1, m2, self.W, self.U, self.V, self.b)

    def __call__(self, modalities):
        if len(modalities) == 1:
            return modalities[0]
        assert len(modalities) == 2
        m1, m2 = modalities[0], modalities[1]
        if self.flip:
            m1, m2 = modalities[1], modalities[0]
        if self.flatten:
            m1 = m1.reshape(m1.shape[0], -1)
            m2 = m2.reshape(m2.shape[0], -1)
        m1 = m1.astype(jnp.float32)
        m2 = m2.astype(jnp.float32)
        if self.output == 'matrix':
            return self._forward_matrix(m1, m2)
        if self.output == 'vector':
            return self._forward_vector(m1, m2)
        return self._forward_scalar(m1, m2)


if __name__ == "__main__":
    key = jax.random.PRNGKey(0)
    k1, k2, k3, k4, kp1, kp2, kp3 = jax.random.split(key, 7)

    # ---- 'matrix' mode: NCHW conv features, flatten=True ----
    x1 = jax.random.normal(k1, (2, 4, 8, 8), jnp.float32)    # modality 1 -> n = 256 flattened
    x2 = jax.random.normal(k2, (2, 4, 2, 2), jnp.float32)    # modality 2 -> m = 16 flattened
    m1f, m2f = x1.reshape(2, -1), x2.reshape(2, -1)

    def matrix_ref(fus):
        Wp = jnp.einsum('bn,nmd->bmd', m1f, fus.W) + fus.V
        bp = m1f @ fus.U + fus.b
        return jnp.einsum('bm,bmd->bd', m2f, Wp) + bp

    # (a) f32 compute, default block picker (single reduction step) -- tight structural check.
    fus_f32 = BimodalInteractionFusion((256, 16), 32, 'matrix', flatten=True, key=kp1,
                                       compute_dtype=jnp.float32)
    out_f32 = jax.block_until_ready(fus_f32([x1, x2]))
    assert out_f32.shape == (2, 32)
    assert jnp.allclose(out_f32, matrix_ref(fus_f32), rtol=1e-3, atol=1e-3)

    # (b) bf16 compute (bandwidth-bound path) with block_n=128 so the reduction grid axis
    #     really runs 2 accumulation steps; tolerance sized for bf16 MXU operands.
    fus_bf16 = BimodalInteractionFusion((256, 16), 32, 'matrix', flatten=True, key=kp1,
                                        compute_dtype=jnp.bfloat16, block_n=128)
    out_bf16 = jax.block_until_ready(fus_bf16([x1, x2]))
    assert out_bf16.shape == (2, 32)
    assert jnp.allclose(out_bf16, matrix_ref(fus_bf16), rtol=2e-2, atol=5e-2)

    # ---- 'vector' mode ----
    v1 = jax.random.normal(k3, (2, 64), jnp.float32)
    v2 = jax.random.normal(k4, (2, 16), jnp.float32)
    fus_vec = BimodalInteractionFusion((64, 16), 16, 'vector', key=kp2)
    out_vec = jax.block_until_ready(fus_vec([v1, v2]))
    ref_vec = (v1 @ fus_vec.W + fus_vec.V) * v2 + (v1 @ fus_vec.U + fus_vec.b)
    assert jnp.allclose(out_vec, ref_vec, rtol=1e-3, atol=1e-3)

    # ---- 'scalar' mode (with clip) ----
    fus_sca = BimodalInteractionFusion((64, 16), 1, 'scalar', clip=(-1.0, 1.0), key=kp3)
    out_sca = jax.block_until_ready(fus_sca([v1, v2]))
    c1, c2 = jnp.clip(v1, -1.0, 1.0), jnp.clip(v2, -1.0, 1.0)
    wpr = jnp.sum(c1 * fus_sca.W, axis=-1, keepdims=True) + fus_sca.V
    bpr = jnp.sum(c1 * fus_sca.U, axis=-1, keepdims=True) + fus_sca.b
    ref_sca = wpr * c2 + bpr
    assert jnp.allclose(out_sca, ref_sca, rtol=1e-3, atol=1e-3)

    print("KERNEL_OK")
</pallas_src>

<mosaic_0001>
module attributes {stable_mosaic.version = 11 : i64} {
  func.func @_matrix_kernel(%arg0: i32, %arg1: i32, %arg2: i32, %arg3: memref<2x4096xf32, #tpu.memory_space<vmem>>, %arg4: memref<2x256xf32, #tpu.memory_space<vmem>>, %arg5: memref<2x16xf32, #tpu.memory_space<vmem>>, %arg6: memref<4096x32xf32, #tpu.memory_space<vmem>>, %arg7: memref<256x32xf32, #tpu.memory_space<vmem>>, %arg8: memref<16x32xf32, #tpu.memory_space<vmem>>, %arg9: memref<1x32xf32, #tpu.memory_space<vmem>>, %arg10: memref<2x32xf32, #tpu.memory_space<vmem>>, %arg11: memref<2x32xf32, #tpu.memory_space<vmem>>) attributes {dimension_semantics = [#tpu.dimension_semantics<parallel>, #tpu.dimension_semantics<parallel>, #tpu.dimension_semantics<arbitrary>], iteration_bounds = array<i64: 1, 1, 1>, scalar_prefetch = 0 : i64, scratch_operands = 1 : i64, tpu.core_type = #tpu.core_type<tc>, window_params = [{transform_indices = @transform_0, window_bounds = array<i64: 2, 4096>}, {transform_indices = @transform_1, window_bounds = array<i64: 2, 256>}, {transform_indices = @transform_2, window_bounds = array<i64: 2, 16>}, {transform_indices = @transform_3, window_bounds = array<i64: 4096, 32>}, {transform_indices = @transform_4, window_bounds = array<i64: 256, 32>}, {transform_indices = @transform_5, window_bounds = array<i64: 16, 32>}, {transform_indices = @transform_6, window_bounds = array<i64: 1, 32>}, {transform_indices = @transform_7, window_bounds = array<i64: 2, 32>}]} {
    %c0_i32 = arith.constant 0 : i32
    %0 = arith.cmpi eq, %arg2, %c0_i32 : i32
    %1 = arith.extui %0 : i1 to i32
    %c0_i32_0 = arith.constant 0 : i32
    %2 = arith.cmpi ne, %1, %c0_i32_0 : i32
    scf.if %2 {
      %c0_15 = arith.constant 0 : index
      %c0_16 = arith.constant 0 : index
      %16 = vector.load %arg5[%c0_15, %c0_16] : memref<2x16xf32, #tpu.memory_space<vmem>>, vector<2x16xf32>
      %c0_17 = arith.constant 0 : index
      %c0_18 = arith.constant 0 : index
      %17 = vector.load %arg8[%c0_17, %c0_18] : memref<16x32xf32, #tpu.memory_space<vmem>>, vector<16x32xf32>
      %cst_19 = arith.constant dense<0.000000e+00> : vector<2x32xf32>
      %18 = tpu.matmul %16, %17, %cst_19 {dimension_numbers = #tpu.dot_dimension_numbers<[1], [0], [0], [1], [0, 0, 1, 1], [], []>} : vector<2x16xf32>, vector<16x32xf32>, vector<2x32xf32> -> vector<2x32xf32>
      %c0_20 = arith.constant 0 : index
      %c0_21 = arith.constant 0 : index
      %19 = vector.load %arg9[%c0_20, %c0_21] : memref<1x32xf32, #tpu.memory_space<vmem>>, vector<1x32xf32>
      %20 = vector.broadcast %19 : vector<1x32xf32> to vector<2x32xf32>
      %21 = arith.addf %18, %20 : vector<2x32xf32>
      %c0_22 = arith.constant 0 : index
      %c0_23 = arith.constant 0 : index
      %22 = vector.load %arg11[%c0_22, %c0_23] : memref<2x32xf32, #tpu.memory_space<vmem>>, vector<2x32xf32>
      tpu.vector_store %arg11[%c0_22, %c0_23], %21 {strides = array<i32>} : memref<2x32xf32, #tpu.memory_space<vmem>>, vector<2x32xf32>,
    } else {
    }
    %c0 = arith.constant 0 : index
    %c0_1 = arith.constant 0 : index
    %3 = vector.load %arg11[%c0, %c0_1] : memref<2x32xf32, #tpu.memory_space<vmem>>, vector<2x32xf32>
    %c0_2 = arith.constant 0 : index
    %c0_3 = arith.constant 0 : index
    %4 = vector.load %arg3[%c0_2, %c0_3] : memref<2x4096xf32, #tpu.memory_space<vmem>>, vector<2x4096xf32>
    %c0_4 = arith.constant 0 : index
    %c0_5 = arith.constant 0 : index
    %5 = vector.load %arg6[%c0_4, %c0_5] : memref<4096x32xf32, #tpu.memory_space<vmem>>, vector<4096x32xf32>
    %cst = arith.constant dense<0.000000e+00> : vector<2x32xf32>
    %6 = tpu.matmul %4, %5, %cst {dimension_numbers = #tpu.dot_dimension_numbers<[1], [0], [0], [1], [0, 0, 1, 1], [], []>} : vector<2x4096xf32>, vector<4096x32xf32>, vector<2x32xf32> -> vector<2x32xf32>
    %c0_6 = arith.constant 0 : index
    %c0_7 = arith.constant 0 : index
    %7 = vector.load %arg4[%c0_6, %c0_7] : memref<2x256xf32, #tpu.memory_space<vmem>>, vector<2x256xf32>
    %c0_8 = arith.constant 0 : index
    %c0_9 = arith.constant 0 : index
    %8 = vector.load %arg7[%c0_8, %c0_9] : memref<256x32xf32, #tpu.memory_space<vmem>>, vector<256x32xf32>
    %cst_10 = arith.constant dense<0.000000e+00> : vector<2x32xf32>
    %9 = tpu.matmul %7, %8, %cst_10 {dimension_numbers = #tpu.dot_dimension_numbers<[1], [0], [0], [1], [0, 0, 1, 1], [], []>} : vector<2x256xf32>, vector<256x32xf32>, vector<2x32xf32> -> vector<2x32xf32>
    %10 = arith.addf %6, %9 : vector<2x32xf32>
    %11 = arith.addf %3, %10 : vector<2x32xf32>
    %c0_11 = arith.constant 0 : index
    %c0_12 = arith.constant 0 : index
    %12 = vector.load %arg11[%c0_11, %c0_12] : memref<2x32xf32, #tpu.memory_space<vmem>>, vector<2x32xf32>
    tpu.vector_store %arg11[%c0_11, %c0_12], %11 {strides = array<i32>} : memref<2x32xf32, #tpu.memory_space<vmem>>, vector<2x32xf32>,
    %c0_i32_13 = arith.constant 0 : i32
    %13 = arith.cmpi eq, %arg2, %c0_i32_13 : i32
    %14 = arith.extui %13 : i1 to i32
    %c0_i32_14 = arith.constant 0 : i32
    %15 = arith.cmpi ne, %14, %c0_i32_14 : i32
    scf.if %15 {
      %c0_15 = arith.constant 0 : index
      %c0_16 = arith.constant 0 : index
      %16 = vector.load %arg11[%c0_15, %c0_16] : memref<2x32xf32, #tpu.memory_space<vmem>>, vector<2x32xf32>
      %c0_17 = arith.constant 0 : index
      %c0_18 = arith.constant 0 : index
      %17 = vector.load %arg10[%c0_17, %c0_18] : memref<2x32xf32, #tpu.memory_space<vmem>>, vector<2x32xf32>
      tpu.vector_store %arg10[%c0_17, %c0_18], %16 {strides = array<i32>} : memref<2x32xf32, #tpu.memory_space<vmem>>, vector<2x32xf32>,
    } else {
    }
    return
  }
  func.func @transform_0(%arg0: i32, %arg1: i32, %arg2: i32) -> (i32, i32) {
    %c0_i32 = arith.constant 0 : i32
    return %arg0, %arg2 : i32, i32
  }
  func.func @transform_1(%arg0: i32, %arg1: i32, %arg2: i32) -> (i32, i32) {
    %c0_i32 = arith.constant 0 : i32
    return %arg0, %arg2 : i32, i32
  }
  func.func @transform_2(%arg0: i32, %arg1: i32, %arg2: i32) -> (i32, i32) {
    %c0_i32 = arith.constant 0 : i32
    %c0_i32_0 = arith.constant 0 : i32
    return %arg0, %c0_i32 : i32, i32
  }
  func.func @transform_3(%arg0: i32, %arg1: i32, %arg2: i32) -> (i32, i32) {
    %c0_i32 = arith.constant 0 : i32
    return %arg2, %arg1 : i32, i32
  }
  func.func @transform_4(%arg0: i32, %arg1: i32, %arg2: i32) -> (i32, i32) {
    %c0_i32 = arith.constant 0 : i32
    return %arg2, %arg1 : i32, i32
  }
  func.func @transform_5(%arg0: i32, %arg1: i32, %arg2: i32) -> (i32, i32) {
    %c0_i32 = arith.constant 0 : i32
    %c0_i32_0 = arith.constant 0 : i32
    return %c0_i32, %arg1 : i32, i32
  }
  func.func @transform_6(%arg0: i32, %arg1: i32, %arg2: i32) -> (i32, i32) {
    %c0_i32 = arith.constant 0 : i32
    %c0_i32_0 = arith.constant 0 : i32
    return %c0_i32, %arg1 : i32, i32
  }
  func.func @transform_7(%arg0: i32, %arg1: i32, %arg2: i32) -> (i32, i32) {
    %c0_i32 = arith.constant 0 : i32
    return %arg0, %arg1 : i32, i32
  }
}

</mosaic_0001>

<llo_original>
// kernel: tpu_custom_call.1
$region0: #{tpu_custom_call.1}
  #allocation0 [shape = 'u32[]', space=smem, size = 0x4, offset = 0x4, fixed_abs, tag = 'smem constant byte address 0x4 - core index']
  #allocation1 [shape = 'u32[72,128]{1,0:T(1,128)}', space=vmem, size = 0x9000, scoped, tag = 'internal scratch']
  #allocation2 [shape = 'f32[2,32]{1,0:T(2,128)}', space=vmem, size = 0x400, scoped, tag = 'scratch operand']
  %s0 = inlined_call_operand.vmem [shape: f32[2,4096], index: 0, kind: input, shape index: {}]
  %s1 = inlined_call_operand.vmem [shape: f32[2,256], index: 1, kind: input, shape index: {}]
  %s2 = inlined_call_operand.vmem [shape: f32[2,16], index: 2, kind: input, shape index: {}]
  %s3 = inlined_call_operand.vmem [shape: f32[4096,32], index: 3, kind: input, shape index: {}]
  %s4 = inlined_call_operand.vmem [shape: f32[256,32], index: 4, kind: input, shape index: {}]
  %s5 = inlined_call_operand.vmem [shape: f32[16,32], index: 5, kind: input, shape index: {}]
  %s6 = inlined_call_operand.vmem [shape: f32[1,32], index: 6, kind: input, shape index: {}]
  %s7 = inlined_call_operand.hbm [shape: f32[2,32], index: 7, kind: output, shape index: {}]
  %s8 = sld [smem:[#allocation0]]
  $region46: #{tpu_custom_call.1} parent=0
    _
  %s10 = ssub.s32 1, %s8
  %s11 = scalar_select 0, %s10, %s8
  $region1: #{tpu_custom_call.1} parent=0
    #allocation3 [shape = 'u8[1024]{0}', space=vmem, size = 0x400, scoped, tag = 'output window, operand 0, single buffered']
    #allocation4 [shape = 's32[1]{0}', space=sflag, size = 0x4, scoped, tag = 'scoped memory for tpu_custom_call.1']
    %12 = vsyncpa [#allocation4], 0
    // Predicated region
    $region2: #{tpu_custom_call.1} parent=1 // pred_check
      _
    $region3: #{tpu_custom_call.1} parent=1 // pred_check_branch
      %14 = sbr.rel (0) target = $region5
    $region4: #{tpu_custom_call.1} parent=1 // pred_region
      _
    $region5: #{tpu_custom_call.1} parent=1 // pred_fallthru
      _
    // Predicated region
    $region6: #{tpu_custom_call.1} parent=1 // pred_check
      _
    $region7: #{tpu_custom_call.1} parent=1 // pred_check_branch
      %16 = sbr.rel (0) target = $region9
    $region8: #{tpu_custom_call.1} parent=1 // pred_region
      _
    $region9: #{tpu_custom_call.1} parent=1 // pred_fallthru
      _
    // Predicated region
    $region10: #{tpu_custom_call.1} parent=1 // pred_check
      _
    $region11: #{tpu_custom_call.1} parent=1 // pred_check_branch
      %18 = sbr.rel (0) target = $region13
    $region12: #{tpu_custom_call.1} parent=1 // pred_region
      _
    $region13: #{tpu_custom_call.1} parent=1 // pred_fallthru
      _
    // Predicated region
    $region14: #{tpu_custom_call.1} parent=1 // pred_check
      _
    $region15: #{tpu_custom_call.1} parent=1 // pred_check_branch
      %20 = sbr.rel (0) target = $region17
    $region16: #{tpu_custom_call.1} parent=1 // pred_region
      _
    $region17: #{tpu_custom_call.1} parent=1 // pred_fallthru
      _
    // Predicated region
    $region18: #{tpu_custom_call.1} parent=1 // pred_check
      _
    $region19: #{tpu_custom_call.1} parent=1 // pred_check_branch
      %22 = sbr.rel (0) target = $region21
    $region20: #{tpu_custom_call.1} parent=1 // pred_region
      _
    $region21: #{tpu_custom_call.1} parent=1 // pred_fallthru
      _
    // Predicated region
    $region22: #{tpu_custom_call.1} parent=1 // pred_check
      _
    $region23: #{tpu_custom_call.1} parent=1 // pred_check_branch
      %24 = sbr.rel (0) target = $region25
    $region24: #{tpu_custom_call.1} parent=1 // pred_region
      _
    $region25: #{tpu_custom_call.1} parent=1 // pred_fallthru
      _
    // Predicated region
    $region26: #{tpu_custom_call.1} parent=1 // pred_check
      _
    $region27: #{tpu_custom_call.1} parent=1 // pred_check_branch
      %26 = sbr.rel (0) target = $region29
    $region28: #{tpu_custom_call.1} parent=1 // pred_region
      _
    $region29: #{tpu_custom_call.1} parent=1 // pred_fallthru
      _
    %p27 = scmp.eq.s32.totalorder 0, 0
    // Predicated region
    $region30: #{tpu_custom_call.1} parent=1 // pred_check
      %p28 = pneg %p27
    $region31: #{tpu_custom_call.1} parent=1 // pred_check_branch
      %30 = sbr.rel (%p28) target = $region33
    $region32: #{tpu_custom_call.1} parent=1 // pred_region
      %v31 = vld [vmem:[%s2] sm:$0x3]
      %v32 = vld [vmem:[%s5] sm:$0xff]
      %v33 = vld [vmem:[%s5 + $0x8] sm:$0xff]
      %v34 = vld [vmem:[%s6] sm:$0x1]
      %v36 = vperm.slane %v34, 0
      %vm38 = vcmask 130048
      %v40 = vsel %vm38, %v31, 0
      %42 = vmatpush.msra.mxu0 0.0
      %43 = vmatpush.msra.mxu0 0.0
      %44 = vmatpush.msra.mxu0 0.0
      %45 = vmatpush.msra.mxu0 0.0
      %46 = vmatpush.msra.mxu0 0.0
      %47 = vmatpush.msra.mxu0 0.0
      %48 = vmatpush.msra.mxu0 0.0
      %49 = vmatpush.msra.mxu0 0.0
      %50 = vmatpush.msra.mxu0 0.0
      %51 = vmatpush.msra.mxu0 0.0
      %52 = vmatpush.msra.mxu0 0.0
      %53 = vmatpush.msra.mxu0 0.0
      %54 = vmatpush.msra.mxu0 0.0
      %55 = vmatpush.msra.mxu0 0.0
      %56 = vmatpush.msra.mxu0 %v33
      %57 = vmatpush.msra.mxu0 %v32
      %58 = vmatmul.f32.gmra.mxu0 %v40
      %v59 = vpop.f32.mrf.mxu0
      %v60 = vadd.f32 %v36, %v59
      %61 = vdwg.mxu0
      %vm62 = vcmask 254976
      %63 = vst.msk [vmem:[#allocation2] sm:$0x3] %vm62, %v60
    $region33: #{tpu_custom_call.1} parent=1 // pred_fallthru
      _
    %v64 = vld [vmem:[#allocation2] sm:$0x3]
    %v65 = vld [vmem:[%s0] sm:$0xff]
    %v66 = vld [vmem:[%s0 + $0x8] sm:$0xff]
    %v67 = vld [vmem:[%s0 + $0x10] sm:$0xff]
    %v68 = vld [vmem:[%s0 + $0x18] sm:$0xff]
    %v69 = vld [vmem:[%s0 + $0x20] sm:$0xff]
    %v70 = vld [vmem:[%s0 + $0x28] sm:$0xff]
    %v71 = vld [vmem:[%s0 + $0x30] sm:$0xff]
    %v72 = vld [vmem:[%s0 + $0x38] sm:$0xff]
    %v73 = vld [vmem:[%s3] sm:$0xff]
    %v74 = vld [vmem:[%s3 + $0x8] sm:$0xff]
    %v75 = vld [vmem:[%s3 + $0x10] sm:$0xff]
    %v76 = vld [vmem:[%s3 + $0x18] sm:$0xff]
    %v77 = vld [vmem:[%s3 + $0x20] sm:$0xff]
    %v78 = vld [vmem:[%s3 + $0x28] sm:$0xff]
    %v79 = vld [vmem:[%s3 + $0x30] sm:$0xff]
    %v80 = vld [vmem:[%s3 + $0x38] sm:$0xff]
    %v81 = vld [vmem:[%s3 + $0x40] sm:$0xff]
    %v82 = vld [vmem:[%s3 + $0x48] sm:$0xff]
    %v83 = vld [vmem:[%s3 + $0x50] sm:$0xff]
    %v84 = vld [vmem:[%s3 + $0x58] sm:$0xff]
    %v85 = vld [vmem:[%s3 + $0x60] sm:$0xff]
    %v86 = vld [vmem:[%s3 + $0x68] sm:$0xff]
    %v87 = vld [vmem:[%s3 + $0x70] sm:$0xff]
    %v88 = vld [vmem:[%s3 + $0x78] sm:$0xff]
    %v89 = vld [vmem:[%s3 + $0x80] sm:$0xff]
    %v90 = vld [vmem:[%s3 + $0x88] sm:$0xff]
    %v91 = vld [vmem:[%s3 + $0x90] sm:$0xff]
    %v92 = vld [vmem:[%s3 + $0x98] sm:$0xff]
    %v93 = vld [vmem:[%s3 + $0xa0] sm:$0xff]
    %v94 = vld [vmem:[%s3 + $0xa8] sm:$0xff]
    %v95 = vld [vmem:[%s3 + $0xb0] sm:$0xff]
    %v96 = vld [vmem:[%s3 + $0xb8] sm:$0xff]
    %v97 = vld [vmem:[%s3 + $0xc0] sm:$0xff]
    %v98 = vld [vmem:[%s3 + $0xc8] sm:$0xff]
    %v99 = vld [vmem:[%s3 + $0xd0] sm:$0xff]
    %v100 = vld [vmem:[%s3 + $0xd8] sm:$0xff]
    %v101 = vld [vmem:[%s3 + $0xe0] sm:$0xff]
    %v102 = vld [vmem:[%s3 + $0xe8] sm:$0xff]
    %v103 = vld [vmem:[%s3 + $0xf0] sm:$0xff]
    %v104 = vld [vmem:[%s3 + $0xf8] sm:$0xff]
    %v105 = vld [vmem:[%s3 + $0x100] sm:$0xff]
    %v106 = vld [vmem:[%s3 + $0x108] sm:$0xff]
    %v107 = vld [vmem:[%s3 + $0x110] sm:$0xff]
    %v108 = vld [vmem:[%s3 + $0x118] sm:$0xff]
    %v109 = vld [vmem:[%s3 + $0x120] sm:$0xff]
    %v110 = vld [vmem:[%s3 + $0x128] sm:$0xff]
    %v111 = vld [vmem:[%s3 + $0x130] sm:$0xff]
    %v112 = vld [vmem:[%s3 + $0x138] sm:$0xff]
    %v113 = vld [vmem:[%s3 + $0x140] sm:$0xff]
    %v114 = vld [vmem:[%s3 + $0x148] sm:$0xff]
    %v115 = vld [vmem:[%s3 + $0x150] sm:$0xff]
    %v116 = vld [vmem:[%s3 + $0x158] sm:$0xff]
    %v117 = vld [vmem:[%s3 + $0x160] sm:$0xff]
    %v118 = vld [vmem:[%s3 + $0x168] sm:$0xff]
    %v119 = vld [vmem:[%s3 + $0x170] sm:$0xff]
    %v120 = vld [vmem:[%s3 + $0x178] sm:$0xff]
    %v121 = vld [vmem:[%s3 + $0x180] sm:$0xff]
    %v122 = vld [vmem:[%s3 + $0x188] sm:$0xff]
    %v123 = vld [vmem:[%s3 + $0x190] sm:$0xff]
    %v124 = vld [vmem:[%s3 + $0x198] sm:$0xff]
    %v125 = vld [vmem:[%s3 + $0x1a0] sm:$0xff]
    %v126 = vld [vmem:[%s3 + $0x1a8] sm:$0xff]
    %v127 = vld [vmem:[%s3 + $0x1b0] sm:$0xff]
    %v128 = vld [vmem:[%s3 + $0x1b8] sm:$0xff]
    %v129 = vld [vmem:[%s3 + $0x1c0] sm:$0xff]
    %v130 = vld [vmem:[%s3 + $0x1c8] sm:$0xff]
    %v131 = vld [vmem:[%s3 + $0x1d0] sm:$0xff]
    %v132 = vld [vmem:[%s3 + $0x1d8] sm:$0xff]
    %v133 = vld [vmem:[%s3 + $0x1e0] sm:$0xff]
    %v134 = vld [vmem:[%s3 + $0x1e8] sm:$0xff]
    %v135 = vld [vmem:[%s3 + $0x1f0] sm:$0xff]
    %v136 = vld [vmem:[%s3 + $0x1f8] sm:$0xff]
    %v137 = vld [vmem:[%s3 + $0x200] sm:$0xff]
    %v138 = vld [vmem:[%s3 + $0x208] sm:$0xff]
    %v139 = vld [vmem:[%s3 + $0x210] sm:$0xff]
    %v140 = vld [vmem:[%s3 + $0x218] sm:$0xff]
    %v141 = vld [vmem:[%s3 + $0x220] sm:$0xff]
    %v142 = vld [vmem:[%s3 + $0x228] sm:$0xff]
    %v143 = vld [vmem:[%s3 + $0x230] sm:$0xff]
    %v144 = vld [vmem:[%s3 + $0x238] sm:$0xff]
    %v145 = vld [vmem:[%s3 + $0x240] sm:$0xff]
    %v146 = vld [vmem:[%s3 + $0x248] sm:$0xff]
    %v147 = vld [vmem:[%s3 + $0x250] sm:$0xff]
    %v148 = vld [vmem:[%s3 + $0x258] sm:$0xff]
    %v149 = vld [vmem:[%s3 + $0x260] sm:$0xff]
    %v150 = vld [vmem:[%s3 + $0x268] sm:$0xff]
    %v151 = vld [vmem:[%s3 + $0x270] sm:$0xff]
    %v152 = vld [vmem:[%s3 + $0x278] sm:$0xff]
    %v153 = vld [vmem:[%s3 + $0x280] sm:$0xff]
    %v154 = vld [vmem:[%s3 + $0x288] sm:$0xff]
    %v155 = vld [vmem:[%s3 + $0x290] sm:$0xff]
    %v156 = vld [vmem:[%s3 + $0x298] sm:$0xff]
    %v157 = vld [vmem:[%s3 + $0x2a0] sm:$0xff]
    %v158 = vld [vmem:[%s3 + $0x2a8] sm:$0xff]
    %v159 = vld [vmem:[%s3 + $0x2b0] sm:$0xff]
    %v160 = vld [vmem:[%s3 + $0x2b8] sm:$0xff]
    %v161 = vld [vmem:[%s3 + $0x2c0] sm:$0xff]
    %v162 = vld [vmem:[%s3 + $0x2c8] sm:$0xff]
    %v163 = vld [vmem:[%s3 + $0x2d0] sm:$0xff]
    %v164 = vld [vmem:[%s3 + $0x2d8] sm:$0xff]
    %v165 = vld [vmem:[%s3 + $0x2e0] sm:$0xff]
    %v166 = vld [vmem:[%s3 + $0x2e8] sm:$0xff]
    %v167 = vld [vmem:[%s3 + $0x2f0] sm:$0xff]
    %v168 = vld [vmem:[%s3 + $0x2f8] sm:$0xff]
    %v169 = vld [vmem:[%s3 + $0x300] sm:$0xff]
    %v170 = vld [vmem:[%s3 + $0x308] sm:$0xff]
    %v171 = vld [vmem:[%s3 + $0x310] sm:$0xff]
    %v172 = vld [vmem:[%s3 + $0x318] sm:$0xff]
    %v173 = vld [vmem:[%s3 + $0x320] sm:$0xff]
    %v174 = vld [vmem:[%s3 + $0x328] sm:$0xff]
    %v175 = vld [vmem:[%s3 + $0x330] sm:$0xff]
    %v176 = vld [vmem:[%s3 + $0x338] sm:$0xff]
    %v177 = vld [vmem:[%s3 + $0x340] sm:$0xff]
    %v178 = vld [vmem:[%s3 + $0x348] sm:$0xff]
    %v179 = vld [vmem:[%s3 + $0x350] sm:$0xff]
    %v180 = vld [vmem:[%s3 + $0x358] sm:$0xff]
    %v181 = vld [vmem:[%s3 + $0x360] sm:$0xff]
    %v182 = vld [vmem:[%s3 + $0x368] sm:$0xff]
    %v183 = vld [vmem:[%s3 + $0x370] sm:$0xff]
    %v184 = vld [vmem:[%s3 + $0x378] sm:$0xff]
    %v185 = vld [vmem:[%s3 + $0x380] sm:$0xff]
    %v186 = vld [vmem:[%s3 + $0x388] sm:$0xff]
    %v187 = vld [vmem:[%s3 + $0x390] sm:$0xff]
    %v188 = vld [vmem:[%s3 + $0x398] sm:$0xff]
    %v189 = vld [vmem:[%s3 + $0x3a0] sm:$0xff]
    %v190 = vld [vmem:[%s3 + $0x3a8] sm:$0xff]
    %v191 = vld [vmem:[%s3 + $0x3b0] sm:$0xff]
    %v192 = vld [vmem:[%s3 + $0x3b8] sm:$0xff]
    %v193 = vld [vmem:[%s3 + $0x3c0] sm:$0xff]
    %v194 = vld [vmem:[%s3 + $0x3c8] sm:$0xff]
    %v195 = vld [vmem:[%s3 + $0x3d0] sm:$0xff]
    %v196 = vld [vmem:[%s3 + $0x3d8] sm:$0xff]
    %v197 = vld [vmem:[%s3 + $0x3e0] sm:$0xff]
    %v198 = vld [vmem:[%s3 + $0x3e8] sm:$0xff]
    %v199 = vld [vmem:[%s3 + $0x3f0] sm:$0xff]
    %v200 = vld [vmem:[%s3 + $0x3f8] sm:$0xff]
    %v201 = vld [vmem:[%s3 + $0x400] sm:$0xff]
    %v202 = vld [vmem:[%s3 + $0x408] sm:$0xff]
    %v203 = vld [vmem:[%s3 + $0x410] sm:$0xff]
    %v204 = vld [vmem:[%s3 + $0x418] sm:$0xff]
    %v205 = vld [vmem:[%s3 + $0x420] sm:$0xff]
    %v206 = vld [vmem:[%s3 + $0x428] sm:$0xff]
    %v207 = vld [vmem:[%s3 + $0x430] sm:$0xff]
    %v208 = vld [vmem:[%s3 + $0x438] sm:$0xff]
    %v209 = vld [vmem:[%s3 + $0x440] sm:$0xff]
    %v210 = vld [vmem:[%s3 + $0x448] sm:$0xff]
    %v211 = vld [vmem:[%s3 + $0x450] sm:$0xff]
    %v212 = vld [vmem:[%s3 + $0x458] sm:$0xff]
    %v213 = vld [vmem:[%s3 + $0x460] sm:$0xff]
    %v214 = vld [vmem:[%s3 + $0x468] sm:$0xff]
    %v215 = vld [vmem:[%s3 + $0x470] sm:$0xff]
    %v216 = vld [vmem:[%s3 + $0x478] sm:$0xff]
    %v217 = vld [vmem:[%s3 + $0x480] sm:$0xff]
    %v218 = vld [vmem:[%s3 + $0x488] sm:$0xff]
    %v219 = vld [vmem:[%s3 + $0x490] sm:$0xff]
    %v220 = vld [vmem:[%s3 + $0x498] sm:$0xff]
    %v221 = vld [vmem:[%s3 + $0x4a0] sm:$0xff]
    %v222 = vld [vmem:[%s3 + $0x4a8] sm:$0xff]
    %v223 = vld [vmem:[%s3 + $0x4b0] sm:$0xff]
    %v224 = vld [vmem:[%s3 + $0x4b8] sm:$0xff]
    %v225 = vld [vmem:[%s3 + $0x4c0] sm:$0xff]
    %v226 = vld [vmem:[%s3 + $0x4c8] sm:$0xff]
    %v227 = vld [vmem:[%s3 + $0x4d0] sm:$0xff]
    %v228 = vld [vmem:[%s3 + $0x4d8] sm:$0xff]
    %v229 = vld [vmem:[%s3 + $0x4e0] sm:$0xff]
    %v230 = vld [vmem:[%s3 + $0x4e8] sm:$0xff]
    %v231 = vld [vmem:[%s3 + $0x4f0] sm:$0xff]
    %v232 = vld [vmem:[%s3 + $0x4f8] sm:$0xff]
    %v233 = vld [vmem:[%s3 + $0x500] sm:$0xff]
    %v234 = vld [vmem:[%s3 + $0x508] sm:$0xff]
    %v235 = vld [vmem:[%s3 + $0x510] sm:$0xff]
    %v236 = vld [vmem:[%s3 + $0x518] sm:$0xff]
    %v237 = vld [vmem:[%s3 + $0x520] sm:$0xff]
    %v238 = vld [vmem:[%s3 + $0x528] sm:$0xff]
    %v239 = vld [vmem:[%s3 + $0x530] sm:$0xff]
    %v240 = vld [vmem:[%s3 + $0x538] sm:$0xff]
    %v241 = vld [vmem:[%s3 + $0x540] sm:$0xff]
    %v242 = vld [vmem:[%s3 + $0x548] sm:$0xff]
    %v243 = vld [vmem:[%s3 + $0x550] sm:$0xff]
    %v244 = vld [vmem:[%s3 + $0x558] sm:$0xff]
    %v245 = vld [vmem:[%s3 + $0x560] sm:$0xff]
    %v246 = vld [vmem:[%s3 + $0x568] sm:$0xff]
    %v247 = vld [vmem:[%s3 + $0x570] sm:$0xff]
    %v248 = vld [vmem:[%s3 + $0x578] sm:$0xff]
    %v249 = vld [vmem:[%s3 + $0x580] sm:$0xff]
    %v250 = vld [vmem:[%s3 + $0x588] sm:$0xff]
    %v251 = vld [vmem:[%s3 + $0x590] sm:$0xff]
    %v252 = vld [vmem:[%s3 + $0x598] sm:$0xff]
    %v253 = vld [vmem:[%s3 + $0x5a0] sm:$0xff]
    %v254 = vld [vmem:[%s3 + $0x5a8] sm:$0xff]
    %v255 = vld [vmem:[%s3 + $0x5b0] sm:$0xff]
    %v256 = vld [vmem:[%s3 + $0x5b8] sm:$0xff]
    %v257 = vld [vmem:[%s3 + $0x5c0] sm:$0xff]
    %v258 = vld [vmem:[%s3 + $0x5c8] sm:$0xff]
    %v259 = vld [vmem:[%s3 + $0x5d0] sm:$0xff]
    %v260 = vld [vmem:[%s3 + $0x5d8] sm:$0xff]
    %v261 = vld [vmem:[%s3 + $0x5e0] sm:$0xff]
    %v262 = vld [vmem:[%s3 + $0x5e8] sm:$0xff]
    %v263 = vld [vmem:[%s3 + $0x5f0] sm:$0xff]
    %v264 = vld [vmem:[%s3 + $0x5f8] sm:$0xff]
    %v265 = vld [vmem:[%s3 + $0x600] sm:$0xff]
    %v266 = vld [vmem:[%s3 + $0x608] sm:$0xff]
    %v267 = vld [vmem:[%s3 + $0x610] sm:$0xff]
    %v268 = vld [vmem:[%s3 + $0x618] sm:$0xff]
    %v269 = vld [vmem:[%s3 + $0x620] sm:$0xff]
    %v270 = vld [vmem:[%s3 + $0x628] sm:$0xff]
    %v271 = vld [vmem:[%s3 + $0x630] sm:$0xff]
    %v272 = vld [vmem:[%s3 + $0x638] sm:$0xff]
    %v273 = vld [vmem:[%s3 + $0x640] sm:$0xff]
    %v274 = vld [vmem:[%s3 + $0x648] sm:$0xff]
    %v275 = vld [vmem:[%s3 + $0x650] sm:$0xff]
    %v276 = vld [vmem:[%s3 + $0x658] sm:$0xff]
    %v277 = vld [vmem:[%s3 + $0x660] sm:$0xff]
    %v278 = vld [vmem:[%s3 + $0x668] sm:$0xff]
    %v279 = vld [vmem:[%s3 + $0x670] sm:$0xff]
    %v280 = vld [vmem:[%s3 + $0x678] sm:$0xff]
    %v281 = vld [vmem:[%s3 + $0x680] sm:$0xff]
    %v282 = vld [vmem:[%s3 + $0x688] sm:$0xff]
    %v283 = vld [vmem:[%s3 + $0x690] sm:$0xff]
    %v284 = vld [vmem:[%s3 + $0x698] sm:$0xff]
    %v285 = vld [vmem:[%s3 + $0x6a0] sm:$0xff]
    %v286 = vld [vmem:[%s3 + $0x6a8] sm:$0xff]
    %v287 = vld [vmem:[%s3 + $0x6b0] sm:$0xff]
    %v288 = vld [vmem:[%s3 + $0x6b8] sm:$0xff]
    %v289 = vld [vmem:[%s3 + $0x6c0] sm:$0xff]
    %v290 = vld [vmem:[%s3 + $0x6c8] sm:$0xff]
    %v291 = vld [vmem:[%s3 + $0x6d0] sm:$0xff]
    %v292 = vld [vmem:[%s3 + $0x6d8] sm:$0xff]
    %v293 = vld [vmem:[%s3 + $0x6e0] sm:$0xff]
    %v294 = vld [vmem:[%s3 + $0x6e8] sm:$0xff]
    %v295 = vld [vmem:[%s3 + $0x6f0] sm:$0xff]
    %v296 = vld [vmem:[%s3 + $0x6f8] sm:$0xff]
    %v297 = vld [vmem:[%s3 + $0x700] sm:$0xff]
    %v298 = vld [vmem:[%s3 + $0x708] sm:$0xff]
    %v299 = vld [vmem:[%s3 + $0x710] sm:$0xff]
    %v300 = vld [vmem:[%s3 + $0x718] sm:$0xff]
    %v301 = vld [vmem:[%s3 + $0x720] sm:$0xff]
    %v302 = vld [vmem:[%s3 + $0x728] sm:$0xff]
    %v303 = vld [vmem:[%s3 + $0x730] sm:$0xff]
    %v304 = vld [vmem:[%s3 + $0x738] sm:$0xff]
    %v305 = vld [vmem:[%s3 + $0x740] sm:$0xff]
    %v306 = vld [vmem:[%s3 + $0x748] sm:$0xff]
    %v307 = vld [vmem:[%s3 + $0x750] sm:$0xff]
    %v308 = vld [vmem:[%s3 + $0x758] sm:$0xff]
    %v309 = vld [vmem:[%s3 + $0x760] sm:$0xff]
    %v310 = vld [vmem:[%s3 + $0x768] sm:$0xff]
    %v311 = vld [vmem:[%s3 + $0x770] sm:$0xff]
    %v312 = vld [vmem:[%s3 + $0x778] sm:$0xff]
    %v313 = vld [vmem:[%s3 + $0x780] sm:$0xff]
    %v314 = vld [vmem:[%s3 + $0x788] sm:$0xff]
    %v315 = vld [vmem:[%s3 + $0x790] sm:$0xff]
    %v316 = vld [vmem:[%s3 + $0x798] sm:$0xff]
    %v317 = vld [vmem:[%s3 + $0x7a0] sm:$0xff]
    %v318 = vld [vmem:[%s3 + $0x7a8] sm:$0xff]
    %v319 = vld [vmem:[%s3 + $0x7b0] sm:$0xff]
    %v320 = vld [vmem:[%s3 + $0x7b8] sm:$0xff]
    %v321 = vld [vmem:[%s3 + $0x7c0] sm:$0xff]
    %v322 = vld [vmem:[%s3 + $0x7c8] sm:$0xff]
    %v323 = vld [vmem:[%s3 + $0x7d0] sm:$0xff]
    %v324 = vld [vmem:[%s3 + $0x7d8] sm:$0xff]
    %v325 = vld [vmem:[%s3 + $0x7e0] sm:$0xff]
    %v326 = vld [vmem:[%s3 + $0x7e8] sm:$0xff]
    %v327 = vld [vmem:[%s3 + $0x7f0] sm:$0xff]
    %v328 = vld [vmem:[%s3 + $0x7f8] sm:$0xff]
    %v329 = vld [vmem:[%s3 + $0x800] sm:$0xff]
    %v330 = vld [vmem:[%s3 + $0x808] sm:$0xff]
    %v331 = vld [vmem:[%s3 + $0x810] sm:$0xff]
    %v332 = vld [vmem:[%s3 + $0x818] sm:$0xff]
    %v333 = vld [vmem:[%s3 + $0x820] sm:$0xff]
    %v334 = vld [vmem:[%s3 + $0x828] sm:$0xff]
    %v335 = vld [vmem:[%s3 + $0x830] sm:$0xff]
    %v336 = vld [vmem:[%s3 + $0x838] sm:$0xff]
    %v337 = vld [vmem:[%s3 + $0x840] sm:$0xff]
    %v338 = vld [vmem:[%s3 + $0x848] sm:$0xff]
    %v339 = vld [vmem:[%s3 + $0x850] sm:$0xff]
    %v340 = vld [vmem:[%s3 + $0x858] sm:$0xff]
    %v341 = vld [vmem:[%s3 + $0x860] sm:$0xff]
    %v342 = vld [vmem:[%s3 + $0x868] sm:$0xff]
    %v343 = vld [vmem:[%s3 + $0x870] sm:$0xff]
    %v344 = vld [vmem:[%s3 + $0x878] sm:$0xff]
    %v345 = vld [vmem:[%s3 + $0x880] sm:$0xff]
    %v346 = vld [vmem:[%s3 + $0x888] sm:$0xff]
    %v347 = vld [vmem:[%s3 + $0x890] sm:$0xff]
    %v348 = vld [vmem:[%s3 + $0x898] sm:$0xff]
    %v349 = vld [vmem:[%s3 + $0x8a0] sm:$0xff]
    %v350 = vld [vmem:[%s3 + $0x8a8] sm:$0xff]
    %v351 = vld [vmem:[%s3 + $0x8b0] sm:$0xff]
    %v352 = vld [vmem:[%s3 + $0x8b8] sm:$0xff]
    %v353 = vld [vmem:[%s3 + $0x8c0] sm:$0xff]
    %v354 = vld [vmem:[%s3 + $0x8c8] sm:$0xff]
    %v355 = vld [vmem:[%s3 + $0x8d0] sm:$0xff]
    %v356 = vld [vmem:[%s3 + $0x8d8] sm:$0xff]
    %v357 = vld [vmem:[%s3 + $0x8e0] sm:$0xff]
    %v358 = vld [vmem:[%s3 + $0x8e8] sm:$0xff]
    %v359 = vld [vmem:[%s3 + $0x8f0] sm:$0xff]
    %v360 = vld [vmem:[%s3 + $0x8f8] sm:$0xff]
    %v361 = vld [vmem:[%s3 + $0x900] sm:$0xff]
    %v362 = vld [vmem:[%s3 + $0x908] sm:$0xff]
    %v363 = vld [vmem:[%s3 + $0x910] sm:$0xff]
    %v364 = vld [vmem:[%s3 + $0x918] sm:$0xff]
    %v365 = vld [vmem:[%s3 + $0x920] sm:$0xff]
    %v366 = vld [vmem:[%s3 + $0x928] sm:$0xff]
    %v367 = vld [vmem:[%s3 + $0x930] sm:$0xff]
    %v368 = vld [vmem:[%s3 + $0x938] sm:$0xff]
    %v369 = vld [vmem:[%s3 + $0x940] sm:$0xff]
    %v370 = vld [vmem:[%s3 + $0x948] sm:$0xff]
    %v371 = vld [vmem:[%s3 + $0x950] sm:$0xff]
    %v372 = vld [vmem:[%s3 + $0x958] sm:$0xff]
    %v373 = vld [vmem:[%s3 + $0x960] sm:$0xff]
    %v374 = vld [vmem:[%s3 + $0x968] sm:$0xff]
    %v375 = vld [vmem:[%s3 + $0x970] sm:$0xff]
    %v376 = vld [vmem:[%s3 + $0x978] sm:$0xff]
    %v377 = vld [vmem:[%s3 + $0x980] sm:$0xff]
    %v378 = vld [vmem:[%s3 + $0x988] sm:$0xff]
    %v379 = vld [vmem:[%s3 + $0x990] sm:$0xff]
    %v380 = vld [vmem:[%s3 + $0x998] sm:$0xff]
    %v381 = vld [vmem:[%s3 + $0x9a0] sm:$0xff]
    %v382 = vld [vmem:[%s3 + $0x9a8] sm:$0xff]
    %v383 = vld [vmem:[%s3 + $0x9b0] sm:$0xff]
    %v384 = vld [vmem:[%s3 + $0x9b8] sm:$0xff]
    %v385 = vld [vmem:[%s3 + $0x9c0] sm:$0xff]
    %v386 = vld [vmem:[%s3 + $0x9c8] sm:$0xff]
    %v387 = vld [vmem:[%s3 + $0x9d0] sm:$0xff]
    %v388 = vld [vmem:[%s3 + $0x9d8] sm:$0xff]
    %v389 = vld [vmem:[%s3 + $0x9e0] sm:$0xff]
    %v390 = vld [vmem:[%s3 + $0x9e8] sm:$0xff]
    %v391 = vld [vmem:[%s3 + $0x9f0] sm:$0xff]
    %v392 = vld [vmem:[%s3 + $0x9f8] sm:$0xff]
    %v393 = vld [vmem:[%s3 + $0xa00] sm:$0xff]
    %v394 = vld [vmem:[%s3 + $0xa08] sm:$0xff]
    %v395 = vld [vmem:[%s3 + $0xa10] sm:$0xff]
    %v396 = vld [vmem:[%s3 + $0xa18] sm:$0xff]
    %v397 = vld [vmem:[%s3 + $0xa20] sm:$0xff]
    %v398 = vld [vmem:[%s3 + $0xa28] sm:$0xff]
    %v399 = vld [vmem:[%s3 + $0xa30] sm:$0xff]
    %v400 = vld [vmem:[%s3 + $0xa38] sm:$0xff]
    %v401 = vld [vmem:[%s3 + $0xa40] sm:$0xff]
    %v402 = vld [vmem:[%s3 + $0xa48] sm:$0xff]
    %v403 = vld [vmem:[%s3 + $0xa50] sm:$0xff]
    %v404 = vld [vmem:[%s3 + $0xa58] sm:$0xff]
    %v405 = vld [vmem:[%s3 + $0xa60] sm:$0xff]
    %v406 = vld [vmem:[%s3 + $0xa68] sm:$0xff]
    %v407 = vld [vmem:[%s3 + $0xa70] sm:$0xff]
    %v408 = vld [vmem:[%s3 + $0xa78] sm:$0xff]
    %v409 = vld [vmem:[%s3 + $0xa80] sm:$0xff]
    %v410 = vld [vmem:[%s3 + $0xa88] sm:$0xff]
    %v411 = vld [vmem:[%s3 + $0xa90] sm:$0xff]
    %v412 = vld [vmem:[%s3 + $0xa98] sm:$0xff]
    %v413 = vld [vmem:[%s3 + $0xaa0] sm:$0xff]
    %v414 = vld [vmem:[%s3 + $0xaa8] sm:$0xff]
    %v415 = vld [vmem:[%s3 + $0xab0] sm:$0xff]
    %v416 = vld [vmem:[%s3 + $0xab8] sm:$0xff]
    %v417 = vld [vmem:[%s3 + $0xac0] sm:$0xff]
    %v418 = vld [vmem:[%s3 + $0xac8] sm:$0xff]
    %v419 = vld [vmem:[%s3 + $0xad0] sm:$0xff]
    %v420 = vld [vmem:[%s3 + $0xad8] sm:$0xff]
    %v421 = vld [vmem:[%s3 + $0xae0] sm:$0xff]
    %v422 = vld [vmem:[%s3 + $0xae8] sm:$0xff]
    %v423 = vld [vmem:[%s3 + $0xaf0] sm:$0xff]
    %v424 = vld [vmem:[%s3 + $0xaf8] sm:$0xff]
    %v425 = vld [vmem:[%s3 + $0xb00] sm:$0xff]
    %v426 = vld [vmem:[%s3 + $0xb08] sm:$0xff]
    %v427 = vld [vmem:[%s3 + $0xb10] sm:$0xff]
    %v428 = vld [vmem:[%s3 + $0xb18] sm:$0xff]
    %v429 = vld [vmem:[%s3 + $0xb20] sm:$0xff]
    %v430 = vld [vmem:[%s3 + $0xb28] sm:$0xff]
    %v431 = vld [vmem:[%s3 + $0xb30] sm:$0xff]
    %v432 = vld [vmem:[%s3 + $0xb38] sm:$0xff]
    %v433 = vld [vmem:[%s3 + $0xb40] sm:$0xff]
    %v434 = vld [vmem:[%s3 + $0xb48] sm:$0xff]
    %v435 = vld [vmem:[%s3 + $0xb50] sm:$0xff]
    %v436 = vld [vmem:[%s3 + $0xb58] sm:$0xff]
    %v437 = vld [vmem:[%s3 + $0xb60] sm:$0xff]
    %v438 = vld [vmem:[%s3 + $0xb68] sm:$0xff]
    %v439 = vld [vmem:[%s3 + $0xb70] sm:$0xff]
    %v440 = vld [vmem:[%s3 + $0xb78] sm:$0xff]
    %v441 = vld [vmem:[%s3 + $0xb80] sm:$0xff]
    %v442 = vld [vmem:[%s3 + $0xb88] sm:$0xff]
    %v443 = vld [vmem:[%s3 + $0xb90] sm:$0xff]
    %v444 = vld [vmem:[%s3 + $0xb98] sm:$0xff]
    %v445 = vld [vmem:[%s3 + $0xba0] sm:$0xff]
    %v446 = vld [vmem:[%s3 + $0xba8] sm:$0xff]
    %v447 = vld [vmem:[%s3 + $0xbb0] sm:$0xff]
    %v448 = vld [vmem:[%s3 + $0xbb8] sm:$0xff]
    %v449 = vld [vmem:[%s3 + $0xbc0] sm:$0xff]
    %v450 = vld [vmem:[%s3 + $0xbc8] sm:$0xff]
    %v451 = vld [vmem:[%s3 + $0xbd0] sm:$0xff]
    %v452 = vld [vmem:[%s3 + $0xbd8] sm:$0xff]
    %v453 = vld [vmem:[%s3 + $0xbe0] sm:$0xff]
    %v454 = vld [vmem:[%s3 + $0xbe8] sm:$0xff]
    %v455 = vld [vmem:[%s3 + $0xbf0] sm:$0xff]
    %v456 = vld [vmem:[%s3 + $0xbf8] sm:$0xff]
    %v457 = vld [vmem:[%s3 + $0xc00] sm:$0xff]
    %v458 = vld [vmem:[%s3 + $0xc08] sm:$0xff]
    %v459 = vld [vmem:[%s3 + $0xc10] sm:$0xff]
    %v460 = vld [vmem:[%s3 + $0xc18] sm:$0xff]
    %v461 = vld [vmem:[%s3 + $0xc20] sm:$0xff]
    %v462 = vld [vmem:[%s3 + $0xc28] sm:$0xff]
    %v463 = vld [vmem:[%s3 + $0xc30] sm:$0xff]
    %v464 = vld [vmem:[%s3 + $0xc38] sm:$0xff]
    %v465 = vld [vmem:[%s3 + $0xc40] sm:$0xff]
    %v466 = vld [vmem:[%s3 + $0xc48] sm:$0xff]
    %v467 = vld [vmem:[%s3 + $0xc50] sm:$0xff]
    %v468 = vld [vmem:[%s3 + $0xc58] sm:$0xff]
    %v469 = vld [vmem:[%s3 + $0xc60] sm:$0xff]
    %v470 = vld [vmem:[%s3 + $0xc68] sm:$0xff]
    %v471 = vld [vmem:[%s3 + $0xc70] sm:$0xff]
    %v472 = vld [vmem:[%s3 + $0xc78] sm:$0xff]
    %v473 = vld [vmem:[%s3 + $0xc80] sm:$0xff]
    %v474 = vld [vmem:[%s3 + $0xc88] sm:$0xff]
    %v475 = vld [vmem:[%s3 + $0xc90] sm:$0xff]
    %v476 = vld [vmem:[%s3 + $0xc98] sm:$0xff]
    %v477 = vld [vmem:[%s3 + $0xca0] sm:$0xff]
    %v478 = vld [vmem:[%s3 + $0xca8] sm:$0xff]
    %v479 = vld [vmem:[%s3 + $0xcb0] sm:$0xff]
    %v480 = vld [vmem:[%s3 + $0xcb8] sm:$0xff]
    %v481 = vld [vmem:[%s3 + $0xcc0] sm:$0xff]
    %v482 = vld [vmem:[%s3 + $0xcc8] sm:$0xff]
    %v483 = vld [vmem:[%s3 + $0xcd0] sm:$0xff]
    %v484 = vld [vmem:[%s3 + $0xcd8] sm:$0xff]
    %v485 = vld [vmem:[%s3 + $0xce0] sm:$0xff]
    %v486 = vld [vmem:[%s3 + $0xce8] sm:$0xff]
    %v487 = vld [vmem:[%s3 + $0xcf0] sm:$0xff]
    %v488 = vld [vmem:[%s3 + $0xcf8] sm:$0xff]
    %v489 = vld [vmem:[%s3 + $0xd00] sm:$0xff]
    %v490 = vld [vmem:[%s3 + $0xd08] sm:$0xff]
    %v491 = vld [vmem:[%s3 + $0xd10] sm:$0xff]
    %v492 = vld [vmem:[%s3 + $0xd18] sm:$0xff]
    %v493 = vld [vmem:[%s3 + $0xd20] sm:$0xff]
    %v494 = vld [vmem:[%s3 + $0xd28] sm:$0xff]
    %v495 = vld [vmem:[%s3 + $0xd30] sm:$0xff]
    %v496 = vld [vmem:[%s3 + $0xd38] sm:$0xff]
    %v497 = vld [vmem:[%s3 + $0xd40] sm:$0xff]
    %v498 = vld [vmem:[%s3 + $0xd48] sm:$0xff]
    %v499 = vld [vmem:[%s3 + $0xd50] sm:$0xff]
    %v500 = vld [vmem:[%s3 + $0xd58] sm:$0xff]
    %v501 = vld [vmem:[%s3 + $0xd60] sm:$0xff]
    %v502 = vld [vmem:[%s3 + $0xd68] sm:$0xff]
    %v503 = vld [vmem:[%s3 + $0xd70] sm:$0xff]
    %v504 = vld [vmem:[%s3 + $0xd78] sm:$0xff]
    %v505 = vld [vmem:[%s3 + $0xd80] sm:$0xff]
    %v506 = vld [vmem:[%s3 + $0xd88] sm:$0xff]
    %v507 = vld [vmem:[%s3 + $0xd90] sm:$0xff]
    %v508 = vld [vmem:[%s3 + $0xd98] sm:$0xff]
    %v509 = vld [vmem:[%s3 + $0xda0] sm:$0xff]
    %v510 = vld [vmem:[%s3 + $0xda8] sm:$0xff]
    %v511 = vld [vmem:[%s3 + $0xdb0] sm:$0xff]
    %v512 = vld [vmem:[%s3 + $0xdb8] sm:$0xff]
    %v513 = vld [vmem:[%s3 + $0xdc0] sm:$0xff]
    %v514 = vld [vmem:[%s3 + $0xdc8] sm:$0xff]
    %v515 = vld [vmem:[%s3 + $0xdd0] sm:$0xff]
    %v516 = vld [vmem:[%s3 + $0xdd8] sm:$0xff]
    %v517 = vld [vmem:[%s3 + $0xde0] sm:$0xff]
    %v518 = vld [vmem:[%s3 + $0xde8] sm:$0xff]
    %v519 = vld [vmem:[%s3 + $0xdf0] sm:$0xff]
    %v520 = vld [vmem:[%s3 + $0xdf8] sm:$0xff]
    %v521 = vld [vmem:[%s3 + $0xe00] sm:$0xff]
    %v522 = vld [vmem:[%s3 + $0xe08] sm:$0xff]
    %v523 = vld [vmem:[%s3 + $0xe10] sm:$0xff]
    %v524 = vld [vmem:[%s3 + $0xe18] sm:$0xff]
    %v525 = vld [vmem:[%s3 + $0xe20] sm:$0xff]
    %v526 = vld [vmem:[%s3 + $0xe28] sm:$0xff]
    %v527 = vld [vmem:[%s3 + $0xe30] sm:$0xff]
    %v528 = vld [vmem:[%s3 + $0xe38] sm:$0xff]
    %v529 = vld [vmem:[%s3 + $0xe40] sm:$0xff]
    %v530 = vld [vmem:[%s3 + $0xe48] sm:$0xff]
    %v531 = vld [vmem:[%s3 + $0xe50] sm:$0xff]
    %v532 = vld [vmem:[%s3 + $0xe58] sm:$0xff]
    %v533 = vld [vmem:[%s3 + $0xe60] sm:$0xff]
    %v534 = vld [vmem:[%s3 + $0xe68] sm:$0xff]
    %v535 = vld [vmem:[%s3 + $0xe70] sm:$0xff]
    %v536 = vld [vmem:[%s3 + $0xe78] sm:$0xff]
    %v537 = vld [vmem:[%s3 + $0xe80] sm:$0xff]
    %v538 = vld [vmem:[%s3 + $0xe88] sm:$0xff]
    %v539 = vld [vmem:[%s3 + $0xe90] sm:$0xff]
    %v540 = vld [vmem:[%s3 + $0xe98] sm:$0xff]
    %v541 = vld [vmem:[%s3 + $0xea0] sm:$0xff]
    %v542 = vld [vmem:[%s3 + $0xea8] sm:$0xff]
    %v543 = vld [vmem:[%s3 + $0xeb0] sm:$0xff]
    %v544 = vld [vmem:[%s3 + $0xeb8] sm:$0xff]
    %v545 = vld [vmem:[%s3 + $0xec0] sm:$0xff]
    %v546 = vld [vmem:[%s3 + $0xec8] sm:$0xff]
    %v547 = vld [vmem:[%s3 + $0xed0] sm:$0xff]
    %v548 = vld [vmem:[%s3 + $0xed8] sm:$0xff]
    %v549 = vld [vmem:[%s3 + $0xee0] sm:$0xff]
    %v550 = vld [vmem:[%s3 + $0xee8] sm:$0xff]
    %v551 = vld [vmem:[%s3 + $0xef0] sm:$0xff]
    %v552 = vld [vmem:[%s3 + $0xef8] sm:$0xff]
    %v553 = vld [vmem:[%s3 + $0xf00] sm:$0xff]
    %v554 = vld [vmem:[%s3 + $0xf08] sm:$0xff]
    %v555 = vld [vmem:[%s3 + $0xf10] sm:$0xff]
    %v556 = vld [vmem:[%s3 + $0xf18] sm:$0xff]
    %v557 = vld [vmem:[%s3 + $0xf20] sm:$0xff]
    %v558 = vld [vmem:[%s3 + $0xf28] sm:$0xff]
    %v559 = vld [vmem:[%s3 + $0xf30] sm:$0xff]
    %v560 = vld [vmem:[%s3 + $0xf38] sm:$0xff]
    %v561 = vld [vmem:[%s3 + $0xf40] sm:$0xff]
    %v562 = vld [vmem:[%s3 + $0xf48] sm:$0xff]
    %v563 = vld [vmem:[%s3 + $0xf50] sm:$0xff]
    %v564 = vld [vmem:[%s3 + $0xf58] sm:$0xff]
    %v565 = vld [vmem:[%s3 + $0xf60] sm:$0xff]
    %v566 = vld [vmem:[%s3 + $0xf68] sm:$0xff]
    %v567 = vld [vmem:[%s3 + $0xf70] sm:$0xff]
    %v568 = vld [vmem:[%s3 + $0xf78] sm:$0xff]
    %v569 = vld [vmem:[%s3 + $0xf80] sm:$0xff]
    %v570 = vld [vmem:[%s3 + $0xf88] sm:$0xff]
    %v571 = vld [vmem:[%s3 + $0xf90] sm:$0xff]
    %v572 = vld [vmem:[%s3 + $0xf98] sm:$0xff]
    %v573 = vld [vmem:[%s3 + $0xfa0] sm:$0xff]
    %v574 = vld [vmem:[%s3 + $0xfa8] sm:$0xff]
    %v575 = vld [vmem:[%s3 + $0xfb0] sm:$0xff]
    %v576 = vld [vmem:[%s3 + $0xfb8] sm:$0xff]
    %v577 = vld [vmem:[%s3 + $0xfc0] sm:$0xff]
    %v578 = vld [vmem:[%s3 + $0xfc8] sm:$0xff]
    %v579 = vld [vmem:[%s3 + $0xfd0] sm:$0xff]
    %v580 = vld [vmem:[%s3 + $0xfd8] sm:$0xff]
    %v581 = vld [vmem:[%s3 + $0xfe0] sm:$0xff]
    %v582 = vld [vmem:[%s3 + $0xfe8] sm:$0xff]
    %v583 = vld [vmem:[%s3 + $0xff0] sm:$0xff]
    %v584 = vld [vmem:[%s3 + $0xff8] sm:$0xff]
    %v585 = vld [vmem:[%s1] sm:$0xf]
    %v586 = vld [vmem:[%s4] sm:$0xff]
    %v587 = vld [vmem:[%s4 + $0x8] sm:$0xff]
    %v588 = vld [vmem:[%s4 + $0x10] sm:$0xff]
    %v589 = vld [vmem:[%s4 + $0x18] sm:$0xff]
    %v590 = vld [vmem:[%s4 + $0x20] sm:$0xff]
    %v591 = vld [vmem:[%s4 + $0x28] sm:$0xff]
    %v592 = vld [vmem:[%s4 + $0x30] sm:$0xff]
    %v593 = vld [vmem:[%s4 + $0x38] sm:$0xff]
    %v594 = vld [vmem:[%s4 + $0x40] sm:$0xff]
    %v595 = vld [vmem:[%s4 + $0x48] sm:$0xff]
    %v596 = vld [vmem:[%s4 + $0x50] sm:$0xff]
    %v597 = vld [vmem:[%s4 + $0x58] sm:$0xff]
    %v598 = vld [vmem:[%s4 + $0x60] sm:$0xff]
    %v599 = vld [vmem:[%s4 + $0x68] sm:$0xff]
    %v600 = vld [vmem:[%s4 + $0x70] sm:$0xff]
    %v601 = vld [vmem:[%s4 + $0x78] sm:$0xff]
    %v602 = vld [vmem:[%s4 + $0x80] sm:$0xff]
    %v603 = vld [vmem:[%s4 + $0x88] sm:$0xff]
    %v604 = vld [vmem:[%s4 + $0x90] sm:$0xff]
    %v605 = vld [vmem:[%s4 + $0x98] sm:$0xff]
    %v606 = vld [vmem:[%s4 + $0xa0] sm:$0xff]
    %v607 = vld [vmem:[%s4 + $0xa8] sm:$0xff]
    %v608 = vld [vmem:[%s4 + $0xb0] sm:$0xff]
    %v609 = vld [vmem:[%s4 + $0xb8] sm:$0xff]
    %v610 = vld [vmem:[%s4 + $0xc0] sm:$0xff]
    %v611 = vld [vmem:[%s4 + $0xc8] sm:$0xff]
    %v612 = vld [vmem:[%s4 + $0xd0] sm:$0xff]
    %v613 = vld [vmem:[%s4 + $0xd8] sm:$0xff]
    %v614 = vld [vmem:[%s4 + $0xe0] sm:$0xff]
    %v615 = vld [vmem:[%s4 + $0xe8] sm:$0xff]
    %v616 = vld [vmem:[%s4 + $0xf0] sm:$0xff]
    %v617 = vld [vmem:[%s4 + $0xf8] sm:$0xff]
    %619 = vst [vmem:[#allocation1] ss:$4 sm:$0xff] %v585
    %v620 = vld.sshfl [vmem:[#allocation1] sm:$0xff pattern:$0x73625140]
    %v621 = vld.sshfl [vmem:[#allocation1 + $0x8] sm:$0xff pattern:$0x73625140]
    %624 = vmatpush.msra.mxu0 %v601
    %625 = vmatpush.msra.mxu0 %v600
    %626 = vmatpush.msra.mxu0 %v599
    %627 = vmatpush.msra.mxu0 %v598
    %628 = vmatpush.msra.mxu0 %v597
    %629 = vmatpush.msra.mxu0 %v596
    %630 = vmatpush.msra.mxu0 %v595
    %631 = vmatpush.msra.mxu0 %v594
    %632 = vmatpush.msra.mxu0 %v593
    %633 = vmatpush.msra.mxu0 %v592
    %634 = vmatpush.msra.mxu0 %v591
    %635 = vmatpush.msra.mxu0 %v590
    %636 = vmatpush.msra.mxu0 %v589
    %637 = vmatpush.msra.mxu0 %v588
    %638 = vmatpush.msra.mxu0 %v587
    %639 = vmatpush.msra.mxu0 %v586
    %640 = vmatmul.f32.gmra.mxu0 %v620
    %v641 = vpop.f32.mrf.mxu0
    %v642 = vadd.f32 0.0, %v641
    %643 = vdwg.mxu0
    %644 = vmatpush.msra.mxu0 %v617
    %645 = vmatpush.msra.mxu0 %v616
    %646 = vmatpush.msra.mxu0 %v615
    %647 = vmatpush.msra.mxu0 %v614
    %648 = vmatpush.msra.mxu0 %v613
    %649 = vmatpush.msra.mxu0 %v612
    %650 = vmatpush.msra.mxu0 %v611
    %651 = vmatpush.msra.mxu0 %v610
    %652 = vmatpush.msra.mxu0 %v609
    %653 = vmatpush.msra.mxu0 %v608
    %654 = vmatpush.msra.mxu0 %v607
    %655 = vmatpush.msra.mxu0 %v606
    %656 = vmatpush.msra.mxu0 %v605
    %657 = vmatpush.msra.mxu0 %v604
    %658 = vmatpush.msra.mxu0 %v603
    %659 = vmatpush.msra.mxu0 %v602
    %660 = vmatmul.f32.gmra.mxu0 %v621
    %v661 = vpop.f32.mrf.mxu0
    %v662 = vadd.f32 %v642, %v661
    %663 = vdwg.mxu0
    %672 = vst [vmem:[#allocation1] ss:$4 sm:$0xff] %v65
    %s673 = scalar_lea.vmem [#allocation1], 32
    %674 = vst [vmem:[%s673] ss:$4 sm:$0xff] %v66
    %v675 = vld.sshfl [vmem:[#allocation1] sm:$0xff pattern:$0x73625140]
    %v676 = vld.sshfl [vmem:[#allocation1 + $0x8] sm:$0xff pattern:$0x73625140]
    %v677 = vld.sshfl [vmem:[#allocation1 + $0x10] sm:$0xff pattern:$0x73625140]
    %v678 = vld.sshfl [vmem:[#allocation1 + $0x18] sm:$0xff pattern:$0x73625140]
    %v679 = vld.sshfl [vmem:[#allocation1 + $0x20] sm:$0xff pattern:$0x73625140]
    %v680 = vld.sshfl [vmem:[#allocation1 + $0x28] sm:$0xff pattern:$0x73625140]
    %v681 = vld.sshfl [vmem:[#allocation1 + $0x30] sm:$0xff pattern:$0x73625140]
    %v682 = vld.sshfl [vmem:[#allocation1 + $0x38] sm:$0xff pattern:$0x73625140]
    %683 = vst [vmem:[#allocation1] ss:$4 sm:$0xff] %v67
    %684 = vst [vmem:[%s673] ss:$4 sm:$0xff] %v68
    %v685 = vld.sshfl [vmem:[#allocation1] sm:$0xff pattern:$0x73625140]
    %v686 = vld.sshfl [vmem:[#allocation1 + $0x8] sm:$0xff pattern:$0x73625140]
    %v687 = vld.sshfl [vmem:[#allocation1 + $0x10] sm:$0xff pattern:$0x73625140]
    %v688 = vld.sshfl [vmem:[#allocation1 + $0x18] sm:$0xff pattern:$0x73625140]
    %v689 = vld.sshfl [vmem:[#allocation1 + $0x20] sm:$0xff pattern:$0x73625140]
    %v690 = vld.sshfl [vmem:[#allocation1 + $0x28] sm:$0xff pattern:$0x73625140]
    %v691 = vld.sshfl [vmem:[#allocation1 + $0x30] sm:$0xff pattern:$0x73625140]
    %v692 = vld.sshfl [vmem:[#allocation1 + $0x38] sm:$0xff pattern:$0x73625140]
    %693 = vst [vmem:[#allocation1] ss:$4 sm:$0xff] %v69
    %694 = vst [vmem:[%s673] ss:$4 sm:$0xff] %v70
    %v695 = vld.sshfl [vmem:[#allocation1] sm:$0xff pattern:$0x73625140]
    %v696 = vld.sshfl [vmem:[#allocation1 + $0x8] sm:$0xff pattern:$0x73625140]
    %v697 = vld.sshfl [vmem:[#allocation1 + $0x10] sm:$0xff pattern:$0x73625140]
    %v698 = vld.sshfl [vmem:[#allocation1 + $0x18] sm:$0xff pattern:$0x73625140]
    %v699 = vld.sshfl [vmem:[#allocation1 + $0x20] sm:$0xff pattern:$0x73625140]
    %v700 = vld.sshfl [vmem:[#allocation1 + $0x28] sm:$0xff pattern:$0x73625140]
    %v701 = vld.sshfl [vmem:[#allocation1 + $0x30] sm:$0xff pattern:$0x73625140]
    %v702 = vld.sshfl [vmem:[#allocation1 + $0x38] sm:$0xff pattern:$0x73625140]
    %703 = vst [vmem:[#allocation1] ss:$4 sm:$0xff] %v71
    %704 = vst [vmem:[%s673] ss:$4 sm:$0xff] %v72
    %v705 = vld.sshfl [vmem:[#allocation1] sm:$0xff pattern:$0x73625140]
    %v706 = vld.sshfl [vmem:[#allocation1 + $0x8] sm:$0xff pattern:$0x73625140]
    %v707 = vld.sshfl [vmem:[#allocation1 + $0x10] sm:$0xff pattern:$0x73625140]
    %v708 = vld.sshfl [vmem:[#allocation1 + $0x18] sm:$0xff pattern:$0x73625140]
    %v709 = vld.sshfl [vmem:[#allocation1 + $0x20] sm:$0xff pattern:$0x73625140]
    %v710 = vld.sshfl [vmem:[#allocation1 + $0x28] sm:$0xff pattern:$0x73625140]
    %v711 = vld.sshfl [vmem:[#allocation1 + $0x30] sm:$0xff pattern:$0x73625140]
    %v712 = vld.sshfl [vmem:[#allocation1 + $0x38] sm:$0xff pattern:$0x73625140]
    %745 = vmatpush.msra.mxu0 %v88
    %746 = vmatpush.msra.mxu0 %v87
    %747 = vmatpush.msra.mxu0 %v86
    %748 = vmatpush.msra.mxu0 %v85
    %749 = vmatpush.msra.mxu0 %v84
    %750 = vmatpush.msra.mxu0 %v83
    %751 = vmatpush.msra.mxu0 %v82
    %752 = vmatpush.msra.mxu0 %v81
    %753 = vmatpush.msra.mxu0 %v80
    %754 = vmatpush.msra.mxu0 %v79
    %755 = vmatpush.msra.mxu0 %v78
    %756 = vmatpush.msra.mxu0 %v77
    %757 = vmatpush.msra.mxu0 %v76
    %758 = vmatpush.msra.mxu0 %v75
    %759 = vmatpush.msra.mxu0 %v74
    %760 = vmatpush.msra.mxu0 %v73
    %761 = vmatmul.f32.gmra.mxu0 %v675
    %v762 = vpop.f32.mrf.mxu0
    %v763 = vadd.f32 %v662, %v762
    %764 = vdwg.mxu0
    %765 = vmatpush.msra.mxu0 %v104
    %766 = vmatpush.msra.mxu0 %v103
    %767 = vmatpush.msra.mxu0 %v102
    %768 = vmatpush.msra.mxu0 %v101
    %769 = vmatpush.msra.mxu0 %v100
    %770 = vmatpush.msra.mxu0 %v99
    %771 = vmatpush.msra.mxu0 %v98
    %772 = vmatpush.msra.mxu0 %v97
    %773 = vmatpush.msra.mxu0 %v96
    %774 = vmatpush.msra.mxu0 %v95
    %775 = vmatpush.msra.mxu0 %v94
    %776 = vmatpush.msra.mxu0 %v93
    %777 = vmatpush.msra.mxu0 %v92
    %778 = vmatpush.msra.mxu0 %v91
    %779 = vmatpush.msra.mxu0 %v90
    %780 = vmatpush.msra.mxu0 %v89
    %781 = vmatmul.f32.gmra.mxu0 %v676
    %v782 = vpop.f32.mrf.mxu0
    %v783 = vadd.f32 %v763, %v782
    %784 = vdwg.mxu0
    %785 = vmatpush.msra.mxu0 %v120
    %786 = vmatpush.msra.mxu0 %v119
    %787 = vmatpush.msra.mxu0 %v118
    %788 = vmatpush.msra.mxu0 %v117
    %789 = vmatpush.msra.mxu0 %v116
    %790 = vmatpush.msra.mxu0 %v115
    %791 = vmatpush.msra.mxu0 %v114
    %792 = vmatpush.msra.mxu0 %v113
    %793 = vmatpush.msra.mxu0 %v112
    %794 = vmatpush.msra.mxu0 %v111
    %795 = vmatpush.msra.mxu0 %v110
    %796 = vmatpush.msra.mxu0 %v109
    %797 = vmatpush.msra.mxu0 %v108
    %798 = vmatpush.msra.mxu0 %v107
    %799 = vmatpush.msra.mxu0 %v106
    %800 = vmatpush.msra.mxu0 %v105
    %801 = vmatmul.f32.gmra.mxu0 %v677
    %v802 = vpop.f32.mrf.mxu0
    %v803 = vadd.f32 %v783, %v802
    %804 = vdwg.mxu0
    %805 = vmatpush.msra.mxu0 %v136
    %806 = vmatpush.msra.mxu0 %v135
    %807 = vmatpush.msra.mxu0 %v134
    %808 = vmatpush.msra.mxu0 %v133
    %809 = vmatpush.msra.mxu0 %v132
    %810 = vmatpush.msra.mxu0 %v131
    %811 = vmatpush.msra.mxu0 %v130
    %812 = vmatpush.msra.mxu0 %v129
    %813 = vmatpush.msra.mxu0 %v128
    %814 = vmatpush.msra.mxu0 %v127
    %815 = vmatpush.msra.mxu0 %v126
    %816 = vmatpush.msra.mxu0 %v125
    %817 = vmatpush.msra.mxu0 %v124
    %818 = vmatpush.msra.mxu0 %v123
    %819 = vmatpush.msra.mxu0 %v122
    %820 = vmatpush.msra.mxu0 %v121
    %821 = vmatmul.f32.gmra.mxu0 %v678
    %v822 = vpop.f32.mrf.mxu0
    %v823 = vadd.f32 %v803, %v822
    %824 = vdwg.mxu0
    %825 = vmatpush.msra.mxu0 %v152
    %826 = vmatpush.msra.mxu0 %v151
    %827 = vmatpush.msra.mxu0 %v150
    %828 = vmatpush.msra.mxu0 %v149
    %829 = vmatpush.msra.mxu0 %v148
    %830 = vmatpush.msra.mxu0 %v147
    %831 = vmatpush.msra.mxu0 %v146
    %832 = vmatpush.msra.mxu0 %v145
    %833 = vmatpush.msra.mxu0 %v144
    %834 = vmatpush.msra.mxu0 %v143
    %835 = vmatpush.msra.mxu0 %v142
    %836 = vmatpush.msra.mxu0 %v141
    %837 = vmatpush.msra.mxu0 %v140
    %838 = vmatpush.msra.mxu0 %v139
    %839 = vmatpush.msra.mxu0 %v138
    %840 = vmatpush.msra.mxu0 %v137
    %841 = vmatmul.f32.gmra.mxu0 %v679
    %v842 = vpop.f32.mrf.mxu0
    %v843 = vadd.f32 %v823, %v842
    %844 = vdwg.mxu0
    %845 = vmatpush.msra.mxu0 %v168
    %846 = vmatpush.msra.mxu0 %v167
    %847 = vmatpush.msra.mxu0 %v166
    %848 = vmatpush.msra.mxu0 %v165
    %849 = vmatpush.msra.mxu0 %v164
    %850 = vmatpush.msra.mxu0 %v163
    %851 = vmatpush.msra.mxu0 %v162
    %852 = vmatpush.msra.mxu0 %v161
    %853 = vmatpush.msra.mxu0 %v160
    %854 = vmatpush.msra.mxu0 %v159
    %855 = vmatpush.msra.mxu0 %v158
    %856 = vmatpush.msra.mxu0 %v157
    %857 = vmatpush.msra.mxu0 %v156
    %858 = vmatpush.msra.mxu0 %v155
    %859 = vmatpush.msra.mxu0 %v154
    %860 = vmatpush.msra.mxu0 %v153
    %861 = vmatmul.f32.gmra.mxu0 %v680
    %v862 = vpop.f32.mrf.mxu0
    %v863 = vadd.f32 %v843, %v862
    %864 = vdwg.mxu0
    %865 = vmatpush.msra.mxu0 %v184
    %866 = vmatpush.msra.mxu0 %v183
    %867 = vmatpush.msra.mxu0 %v182
    %868 = vmatpush.msra.mxu0 %v181
    %869 = vmatpush.msra.mxu0 %v180
    %870 = vmatpush.msra.mxu0 %v179
    %871 = vmatpush.msra.mxu0 %v178
    %872 = vmatpush.msra.mxu0 %v177
    %873 = vmatpush.msra.mxu0 %v176
    %874 = vmatpush.msra.mxu0 %v175
    %875 = vmatpush.msra.mxu0 %v174
    %876 = vmatpush.msra.mxu0 %v173
    %877 = vmatpush.msra.mxu0 %v172
    %878 = vmatpush.msra.mxu0 %v171
    %879 = vmatpush.msra.mxu0 %v170
    %880 = vmatpush.msra.mxu0 %v169
    %881 = vmatmul.f32.gmra.mxu0 %v681
    %v882 = vpop.f32.mrf.mxu0
    %v883 = vadd.f32 %v863, %v882
    %884 = vdwg.mxu0
    %885 = vmatpush.msra.mxu0 %v200
    %886 = vmatpush.msra.mxu0 %v199
    %887 = vmatpush.msra.mxu0 %v198
    %888 = vmatpush.msra.mxu0 %v197
    %889 = vmatpush.msra.mxu0 %v196
    %890 = vmatpush.msra.mxu0 %v195
    %891 = vmatpush.msra.mxu0 %v194
    %892 = vmatpush.msra.mxu0 %v193
    %893 = vmatpush.msra.mxu0 %v192
    %894 = vmatpush.msra.mxu0 %v191
    %895 = vmatpush.msra.mxu0 %v190
    %896 = vmatpush.msra.mxu0 %v189
    %897 = vmatpush.msra.mxu0 %v188
    %898 = vmatpush.msra.mxu0 %v187
    %899 = vmatpush.msra.mxu0 %v186
    %900 = vmatpush.msra.mxu0 %v185
    %901 = vmatmul.f32.gmra.mxu0 %v682
    %v902 = vpop.f32.mrf.mxu0
    %v903 = vadd.f32 %v883, %v902
    %904 = vdwg.mxu0
    %905 = vmatpush.msra.mxu0 %v216
    %906 = vmatpush.msra.mxu0 %v215
    %907 = vmatpush.msra.mxu0 %v214
    %908 = vmatpush.msra.mxu0 %v213
    %909 = vmatpush.msra.mxu0 %v212
    %910 = vmatpush.msra.mxu0 %v211
    %911 = vmatpush.msra.mxu0 %v210
    %912 = vmatpush.msra.mxu0 %v209
    %913 = vmatpush.msra.mxu0 %v208
    %914 = vmatpush.msra.mxu0 %v207
    %915 = vmatpush.msra.mxu0 %v206
    %916 = vmatpush.msra.mxu0 %v205
    %917 = vmatpush.msra.mxu0 %v204
    %918 = vmatpush.msra.mxu0 %v203
    %919 = vmatpush.msra.mxu0 %v202
    %920 = vmatpush.msra.mxu0 %v201
    %921 = vmatmul.f32.gmra.mxu0 %v685
    %v922 = vpop.f32.mrf.mxu0
    %v923 = vadd.f32 %v903, %v922
    %924 = vdwg.mxu0
    %925 = vmatpush.msra.mxu0 %v232
    %926 = vmatpush.msra.mxu0 %v231
    %927 = vmatpush.msra.mxu0 %v230
    %928 = vmatpush.msra.mxu0 %v229
    %929 = vmatpush.msra.mxu0 %v228
    %930 = vmatpush.msra.mxu0 %v227
    %931 = vmatpush.msra.mxu0 %v226
    %932 = vmatpush.msra.mxu0 %v225
    %933 = vmatpush.msra.mxu0 %v224
    %934 = vmatpush.msra.mxu0 %v223
    %935 = vmatpush.msra.mxu0 %v222
    %936 = vmatpush.msra.mxu0 %v221
    %937 = vmatpush.msra.mxu0 %v220
    %938 = vmatpush.msra.mxu0 %v219
    %939 = vmatpush.msra.mxu0 %v218
    %940 = vmatpush.msra.mxu0 %v217
    %941 = vmatmul.f32.gmra.mxu0 %v686
    %v942 = vpop.f32.mrf.mxu0
    %v943 = vadd.f32 %v923, %v942
    %944 = vdwg.mxu0
    %945 = vmatpush.msra.mxu0 %v248
    %946 = vmatpush.msra.mxu0 %v247
    %947 = vmatpush.msra.mxu0 %v246
    %948 = vmatpush.msra.mxu0 %v245
    %949 = vmatpush.msra.mxu0 %v244
    %950 = vmatpush.msra.mxu0 %v243
    %951 = vmatpush.msra.mxu0 %v242
    %952 = vmatpush.msra.mxu0 %v241
    %953 = vmatpush.msra.mxu0 %v240
    %954 = vmatpush.msra.mxu0 %v239
    %955 = vmatpush.msra.mxu0 %v238
    %956 = vmatpush.msra.mxu0 %v237
    %957 = vmatpush.msra.mxu0 %v236
    %958 = vmatpush.msra.mxu0 %v235
    %959 = vmatpush.msra.mxu0 %v234
    %960 = vmatpush.msra.mxu0 %v233
    %961 = vmatmul.f32.gmra.mxu0 %v687
    %v962 = vpop.f32.mrf.mxu0
    %v963 = vadd.f32 %v943, %v962
    %964 = vdwg.mxu0
    %965 = vmatpush.msra.mxu0 %v264
    %966 = vmatpush.msra.mxu0 %v263
    %967 = vmatpush.msra.mxu0 %v262
    %968 = vmatpush.msra.mxu0 %v261
    %969 = vmatpush.msra.mxu0 %v260
    %970 = vmatpush.msra.mxu0 %v259
    %971 = vmatpush.msra.mxu0 %v258
    %972 = vmatpush.msra.mxu0 %v257
    %973 = vmatpush.msra.mxu0 %v256
    %974 = vmatpush.msra.mxu0 %v255
    %975 = vmatpush.msra.mxu0 %v254
    %976 = vmatpush.msra.mxu0 %v253
    %977 = vmatpush.msra.mxu0 %v252
    %978 = vmatpush.msra.mxu0 %v251
    %979 = vmatpush.msra.mxu0 %v250
    %980 = vmatpush.msra.mxu0 %v249
    %981 = vmatmul.f32.gmra.mxu0 %v688
    %v982 = vpop.f32.mrf.mxu0
    %v983 = vadd.f32 %v963, %v982
    %984 = vdwg.mxu0
    %985 = vmatpush.msra.mxu0 %v280
    %986 = vmatpush.msra.mxu0 %v279
    %987 = vmatpush.msra.mxu0 %v278
    %988 = vmatpush.msra.mxu0 %v277
    %989 = vmatpush.msra.mxu0 %v276
    %990 = vmatpush.msra.mxu0 %v275
    %991 = vmatpush.msra.mxu0 %v274
    %992 = vmatpush.msra.mxu0 %v273
    %993 = vmatpush.msra.mxu0 %v272
    %994 = vmatpush.msra.mxu0 %v271
    %995 = vmatpush.msra.mxu0 %v270
    %996 = vmatpush.msra.mxu0 %v269
    %997 = vmatpush.msra.mxu0 %v268
    %998 = vmatpush.msra.mxu0 %v267
    %999 = vmatpush.msra.mxu0 %v266
    %1000 = vmatpush.msra.mxu0 %v265
    %1001 = vmatmul.f32.gmra.mxu0 %v689
    %v1002 = vpop.f32.mrf.mxu0
    %v1003 = vadd.f32 %v983, %v1002
    %1004 = vdwg.mxu0
    %1005 = vmatpush.msra.mxu0 %v296
    %1006 = vmatpush.msra.mxu0 %v295
    %1007 = vmatpush.msra.mxu0 %v294
    %1008 = vmatpush.msra.mxu0 %v293
    %1009 = vmatpush.msra.mxu0 %v292
    %1010 = vmatpush.msra.mxu0 %v291
    %1011 = vmatpush.msra.mxu0 %v290
    %1012 = vmatpush.msra.mxu0 %v289
    %1013 = vmatpush.msra.mxu0 %v288
    %1014 = vmatpush.msra.mxu0 %v287
    %1015 = vmatpush.msra.mxu0 %v286
    %1016 = vmatpush.msra.mxu0 %v285
    %1017 = vmatpush.msra.mxu0 %v284
    %1018 = vmatpush.msra.mxu0 %v283
    %1019 = vmatpush.msra.mxu0 %v282
    %1020 = vmatpush.msra.mxu0 %v281
    %1021 = vmatmul.f32.gmra.mxu0 %v690
    %v1022 = vpop.f32.mrf.mxu0
    %v1023 = vadd.f32 %v1003, %v1022
    %1024 = vdwg.mxu0
    %1025 = vmatpush.msra.mxu0 %v312
    %1026 = vmatpush.msra.mxu0 %v311
    %1027 = vmatpush.msra.mxu0 %v310
    %1028 = vmatpush.msra.mxu0 %v309
    %1029 = vmatpush.msra.mxu0 %v308
    %1030 = vmatpush.msra.mxu0 %v307
    %1031 = vmatpush.msra.mxu0 %v306
    %1032 = vmatpush.msra.mxu0 %v305
    %1033 = vmatpush.msra.mxu0 %v304
    %1034 = vmatpush.msra.mxu0 %v303
    %1035 = vmatpush.msra.mxu0 %v302
    %1036 = vmatpush.msra.mxu0 %v301
    %1037 = vmatpush.msra.mxu0 %v300
    %1038 = vmatpush.msra.mxu0 %v299
    %1039 = vmatpush.msra.mxu0 %v298
    %1040 = vmatpush.msra.mxu0 %v297
    %1041 = vmatmul.f32.gmra.mxu0 %v691
    %v1042 = vpop.f32.mrf.mxu0
    %v1043 = vadd.f32 %v1023, %v1042
    %1044 = vdwg.mxu0
    %1045 = vmatpush.msra.mxu0 %v328
    %1046 = vmatpush.msra.mxu0 %v327
    %1047 = vmatpush.msra.mxu0 %v326
    %1048 = vmatpush.msra.mxu0 %v325
    %1049 = vmatpush.msra.mxu0 %v324
    %1050 = vmatpush.msra.mxu0 %v323
    %1051 = vmatpush.msra.mxu0 %v322
    %1052 = vmatpush.msra.mxu0 %v321
    %1053 = vmatpush.msra.mxu0 %v320
    %1054 = vmatpush.msra.mxu0 %v319
    %1055 = vmatpush.msra.mxu0 %v318
    %1056 = vmatpush.msra.mxu0 %v317
    %1057 = vmatpush.msra.mxu0 %v316
    %1058 = vmatpush.msra.mxu0 %v315
    %1059 = vmatpush.msra.mxu0 %v314
    %1060 = vmatpush.msra.mxu0 %v313
    %1061 = vmatmul.f32.gmra.mxu0 %v692
    %v1062 = vpop.f32.mrf.mxu0
    %v1063 = vadd.f32 %v1043, %v1062
    %1064 = vdwg.mxu0
    %1065 = vmatpush.msra.mxu0 %v344
    %1066 = vmatpush.msra.mxu0 %v343
    %1067 = vmatpush.msra.mxu0 %v342
    %1068 = vmatpush.msra.mxu0 %v341
    %1069 = vmatpush.msra.mxu0 %v340
    %1070 = vmatpush.msra.mxu0 %v339
    %1071 = vmatpush.msra.mxu0 %v338
    %1072 = vmatpush.msra.mxu0 %v337
    %1073 = vmatpush.msra.mxu0 %v336
    %1074 = vmatpush.msra.mxu0 %v335
    %1075 = vmatpush.msra.mxu0 %v334
    %1076 = vmatpush.msra.mxu0 %v333
    %1077 = vmatpush.msra.mxu0 %v332
    %1078 = vmatpush.msra.mxu0 %v331
    %1079 = vmatpush.msra.mxu0 %v330
    %1080 = vmatpush.msra.mxu0 %v329
    %1081 = vmatmul.f32.gmra.mxu0 %v695
    %v1082 = vpop.f32.mrf.mxu0
    %v1083 = vadd.f32 %v1063, %v1082
    %1084 = vdwg.mxu0
    %1085 = vmatpush.msra.mxu0 %v360
    %1086 = vmatpush.msra.mxu0 %v359
    %1087 = vmatpush.msra.mxu0 %v358
    %1088 = vmatpush.msra.mxu0 %v357
    %1089 = vmatpush.msra.mxu0 %v356
    %1090 = vmatpush.msra.mxu0 %v355
    %1091 = vmatpush.msra.mxu0 %v354
    %1092 = vmatpush.msra.mxu0 %v353
    %1093 = vmatpush.msra.mxu0 %v352
    %1094 = vmatpush.msra.mxu0 %v351
    %1095 = vmatpush.msra.mxu0 %v350
    %1096 = vmatpush.msra.mxu0 %v349
    %1097 = vmatpush.msra.mxu0 %v348
    %1098 = vmatpush.msra.mxu0 %v347
    %1099 = vmatpush.msra.mxu0 %v346
    %1100 = vmatpush.msra.mxu0 %v345
    %1101 = vmatmul.f32.gmra.mxu0 %v696
    %v1102 = vpop.f32.mrf.mxu0
    %v1103 = vadd.f32 %v1083, %v1102
    %1104 = vdwg.mxu0
    %1105 = vmatpush.msra.mxu0 %v376
    %1106 = vmatpush.msra.mxu0 %v375
    %1107 = vmatpush.msra.mxu0 %v374
    %1108 = vmatpush.msra.mxu0 %v373
    %1109 = vmatpush.msra.mxu0 %v372
    %1110 = vmatpush.msra.mxu0 %v371
    %1111 = vmatpush.msra.mxu0 %v370
    %1112 = vmatpush.msra.mxu0 %v369
    %1113 = vmatpush.msra.mxu0 %v368
    %1114 = vmatpush.msra.mxu0 %v367
    %1115 = vmatpush.msra.mxu0 %v366
    %1116 = vmatpush.msra.mxu0 %v365
    %1117 = vmatpush.msra.mxu0 %v364
    %1118 = vmatpush.msra.mxu0 %v363
    %1119 = vmatpush.msra.mxu0 %v362
    %1120 = vmatpush.msra.mxu0 %v361
    %1121 = vmatmul.f32.gmra.mxu0 %v697
    %v1122 = vpop.f32.mrf.mxu0
    %v1123 = vadd.f32 %v1103, %v1122
    %1124 = vdwg.mxu0
    %1125 = vmatpush.msra.mxu0 %v392
    %1126 = vmatpush.msra.mxu0 %v391
    %1127 = vmatpush.msra.mxu0 %v390
    %1128 = vmatpush.msra.mxu0 %v389
    %1129 = vmatpush.msra.mxu0 %v388
    %1130 = vmatpush.msra.mxu0 %v387
    %1131 = vmatpush.msra.mxu0 %v386
    %1132 = vmatpush.msra.mxu0 %v385
    %1133 = vmatpush.msra.mxu0 %v384
    %1134 = vmatpush.msra.mxu0 %v383
    %1135 = vmatpush.msra.mxu0 %v382
    %1136 = vmatpush.msra.mxu0 %v381
    %1137 = vmatpush.msra.mxu0 %v380
    %1138 = vmatpush.msra.mxu0 %v379
    %1139 = vmatpush.msra.mxu0 %v378
    %1140 = vmatpush.msra.mxu0 %v377
    %1141 = vmatmul.f32.gmra.mxu0 %v698
    %v1142 = vpop.f32.mrf.mxu0
    %v1143 = vadd.f32 %v1123, %v1142
    %1144 = vdwg.mxu0
    %1145 = vmatpush.msra.mxu0 %v408
    %1146 = vmatpush.msra.mxu0 %v407
    %1147 = vmatpush.msra.mxu0 %v406
    %1148 = vmatpush.msra.mxu0 %v405
    %1149 = vmatpush.msra.mxu0 %v404
    %1150 = vmatpush.msra.mxu0 %v403
    %1151 = vmatpush.msra.mxu0 %v402
    %1152 = vmatpush.msra.mxu0 %v401
    %1153 = vmatpush.msra.mxu0 %v400
    %1154 = vmatpush.msra.mxu0 %v399
    %1155 = vmatpush.msra.mxu0 %v398
    %1156 = vmatpush.msra.mxu0 %v397
    %1157 = vmatpush.msra.mxu0 %v396
    %1158 = vmatpush.msra.mxu0 %v395
    %1159 = vmatpush.msra.mxu0 %v394
    %1160 = vmatpush.msra.mxu0 %v393
    %1161 = vmatmul.f32.gmra.mxu0 %v699
    %v1162 = vpop.f32.mrf.mxu0
    %v1163 = vadd.f32 %v1143, %v1162
    %1164 = vdwg.mxu0
    %1165 = vmatpush.msra.mxu0 %v424
    %1166 = vmatpush.msra.mxu0 %v423
    %1167 = vmatpush.msra.mxu0 %v422
    %1168 = vmatpush.msra.mxu0 %v421
    %1169 = vmatpush.msra.mxu0 %v420
    %1170 = vmatpush.msra.mxu0 %v419
    %1171 = vmatpush.msra.mxu0 %v418
    %1172 = vmatpush.msra.mxu0 %v417
    %1173 = vmatpush.msra.mxu0 %v416
    %1174 = vmatpush.msra.mxu0 %v415
    %1175 = vmatpush.msra.mxu0 %v414
    %1176 = vmatpush.msra.mxu0 %v413
    %1177 = vmatpush.msra.mxu0 %v412
    %1178 = vmatpush.msra.mxu0 %v411
    %1179 = vmatpush.msra.mxu0 %v410
    %1180 = vmatpush.msra.mxu0 %v409
    %1181 = vmatmul.f32.gmra.mxu0 %v700
    %v1182 = vpop.f32.mrf.mxu0
    %v1183 = vadd.f32 %v1163, %v1182
    %1184 = vdwg.mxu0
    %1185 = vmatpush.msra.mxu0 %v440
    %1186 = vmatpush.msra.mxu0 %v439
    %1187 = vmatpush.msra.mxu0 %v438
    %1188 = vmatpush.msra.mxu0 %v437
    %1189 = vmatpush.msra.mxu0 %v436
    %1190 = vmatpush.msra.mxu0 %v435
    %1191 = vmatpush.msra.mxu0 %v434
    %1192 = vmatpush.msra.mxu0 %v433
    %1193 = vmatpush.msra.mxu0 %v432
    %1194 = vmatpush.msra.mxu0 %v431
    %1195 = vmatpush.msra.mxu0 %v430
    %1196 = vmatpush.msra.mxu0 %v429
    %1197 = vmatpush.msra.mxu0 %v428
    %1198 = vmatpush.msra.mxu0 %v427
    %1199 = vmatpush.msra.mxu0 %v426
    %1200 = vmatpush.msra.mxu0 %v425
    %1201 = vmatmul.f32.gmra.mxu0 %v701
    %v1202 = vpop.f32.mrf.mxu0
    %v1203 = vadd.f32 %v1183, %v1202
    %1204 = vdwg.mxu0
    %1205 = vmatpush.msra.mxu0 %v456
    %1206 = vmatpush.msra.mxu0 %v455
    %1207 = vmatpush.msra.mxu0 %v454
    %1208 = vmatpush.msra.mxu0 %v453
    %1209 = vmatpush.msra.mxu0 %v452
    %1210 = vmatpush.msra.mxu0 %v451
    %1211 = vmatpush.msra.mxu0 %v450
    %1212 = vmatpush.msra.mxu0 %v449
    %1213 = vmatpush.msra.mxu0 %v448
    %1214 = vmatpush.msra.mxu0 %v447
    %1215 = vmatpush.msra.mxu0 %v446
    %1216 = vmatpush.msra.mxu0 %v445
    %1217 = vmatpush.msra.mxu0 %v444
    %1218 = vmatpush.msra.mxu0 %v443
    %1219 = vmatpush.msra.mxu0 %v442
    %1220 = vmatpush.msra.mxu0 %v441
    %1221 = vmatmul.f32.gmra.mxu0 %v702
    %v1222 = vpop.f32.mrf.mxu0
    %v1223 = vadd.f32 %v1203, %v1222
    %1224 = vdwg.mxu0
    %1225 = vmatpush.msra.mxu0 %v472
    %1226 = vmatpush.msra.mxu0 %v471
    %1227 = vmatpush.msra.mxu0 %v470
    %1228 = vmatpush.msra.mxu0 %v469
    %1229 = vmatpush.msra.mxu0 %v468
    %1230 = vmatpush.msra.mxu0 %v467
    %1231 = vmatpush.msra.mxu0 %v466
    %1232 = vmatpush.msra.mxu0 %v465
    %1233 = vmatpush.msra.mxu0 %v464
    %1234 = vmatpush.msra.mxu0 %v463
    %1235 = vmatpush.msra.mxu0 %v462
    %1236 = vmatpush.msra.mxu0 %v461
    %1237 = vmatpush.msra.mxu0 %v460
    %1238 = vmatpush.msra.mxu0 %v459
    %1239 = vmatpush.msra.mxu0 %v458
    %1240 = vmatpush.msra.mxu0 %v457
    %1241 = vmatmul.f32.gmra.mxu0 %v705
    %v1242 = vpop.f32.mrf.mxu0
    %v1243 = vadd.f32 %v1223, %v1242
    %1244 = vdwg.mxu0
    %1245 = vmatpush.msra.mxu0 %v488
    %1246 = vmatpush.msra.mxu0 %v487
    %1247 = vmatpush.msra.mxu0 %v486
    %1248 = vmatpush.msra.mxu0 %v485
    %1249 = vmatpush.msra.mxu0 %v484
    %1250 = vmatpush.msra.mxu0 %v483
    %1251 = vmatpush.msra.mxu0 %v482
    %1252 = vmatpush.msra.mxu0 %v481
    %1253 = vmatpush.msra.mxu0 %v480
    %1254 = vmatpush.msra.mxu0 %v479
    %1255 = vmatpush.msra.mxu0 %v478
    %1256 = vmatpush.msra.mxu0 %v477
    %1257 = vmatpush.msra.mxu0 %v476
    %1258 = vmatpush.msra.mxu0 %v475
    %1259 = vmatpush.msra.mxu0 %v474
    %1260 = vmatpush.msra.mxu0 %v473
    %1261 = vmatmul.f32.gmra.mxu0 %v706
    %v1262 = vpop.f32.mrf.mxu0
    %v1263 = vadd.f32 %v1243, %v1262
    %1264 = vdwg.mxu0
    %1265 = vmatpush.msra.mxu0 %v504
    %1266 = vmatpush.msra.mxu0 %v503
    %1267 = vmatpush.msra.mxu0 %v502
    %1268 = vmatpush.msra.mxu0 %v501
    %1269 = vmatpush.msra.mxu0 %v500
    %1270 = vmatpush.msra.mxu0 %v499
    %1271 = vmatpush.msra.mxu0 %v498
    %1272 = vmatpush.msra.mxu0 %v497
    %1273 = vmatpush.msra.mxu0 %v496
    %1274 = vmatpush.msra.mxu0 %v495
    %1275 = vmatpush.msra.mxu0 %v494
    %1276 = vmatpush.msra.mxu0 %v493
    %1277 = vmatpush.msra.mxu0 %v492
    %1278 = vmatpush.msra.mxu0 %v491
    %1279 = vmatpush.msra.mxu0 %v490
    %1280 = vmatpush.msra.mxu0 %v489
    %1281 = vmatmul.f32.gmra.mxu0 %v707
    %v1282 = vpop.f32.mrf.mxu0
    %v1283 = vadd.f32 %v1263, %v1282
    %1284 = vdwg.mxu0
    %1285 = vmatpush.msra.mxu0 %v520
    %1286 = vmatpush.msra.mxu0 %v519
    %1287 = vmatpush.msra.mxu0 %v518
    %1288 = vmatpush.msra.mxu0 %v517
    %1289 = vmatpush.msra.mxu0 %v516
    %1290 = vmatpush.msra.mxu0 %v515
    %1291 = vmatpush.msra.mxu0 %v514
    %1292 = vmatpush.msra.mxu0 %v513
    %1293 = vmatpush.msra.mxu0 %v512
    %1294 = vmatpush.msra.mxu0 %v511
    %1295 = vmatpush.msra.mxu0 %v510
    %1296 = vmatpush.msra.mxu0 %v509
    %1297 = vmatpush.msra.mxu0 %v508
    %1298 = vmatpush.msra.mxu0 %v507
    %1299 = vmatpush.msra.mxu0 %v506
    %1300 = vmatpush.msra.mxu0 %v505
    %1301 = vmatmul.f32.gmra.mxu0 %v708
    %v1302 = vpop.f32.mrf.mxu0
    %v1303 = vadd.f32 %v1283, %v1302
    %1304 = vdwg.mxu0
    %1305 = vmatpush.msra.mxu0 %v536
    %1306 = vmatpush.msra.mxu0 %v535
    %1307 = vmatpush.msra.mxu0 %v534
    %1308 = vmatpush.msra.mxu0 %v533
    %1309 = vmatpush.msra.mxu0 %v532
    %1310 = vmatpush.msra.mxu0 %v531
    %1311 = vmatpush.msra.mxu0 %v530
    %1312 = vmatpush.msra.mxu0 %v529
    %1313 = vmatpush.msra.mxu0 %v528
    %1314 = vmatpush.msra.mxu0 %v527
    %1315 = vmatpush.msra.mxu0 %v526
    %1316 = vmatpush.msra.mxu0 %v525
    %1317 = vmatpush.msra.mxu0 %v524
    %1318 = vmatpush.msra.mxu0 %v523
    %1319 = vmatpush.msra.mxu0 %v522
    %1320 = vmatpush.msra.mxu0 %v521
    %1321 = vmatmul.f32.gmra.mxu0 %v709
    %v1322 = vpop.f32.mrf.mxu0
    %v1323 = vadd.f32 %v1303, %v1322
    %1324 = vdwg.mxu0
    %1325 = vmatpush.msra.mxu0 %v552
    %1326 = vmatpush.msra.mxu0 %v551
    %1327 = vmatpush.msra.mxu0 %v550
    %1328 = vmatpush.msra.mxu0 %v549
    %1329 = vmatpush.msra.mxu0 %v548
    %1330 = vmatpush.msra.mxu0 %v547
    %1331 = vmatpush.msra.mxu0 %v546
    %1332 = vmatpush.msra.mxu0 %v545
    %1333 = vmatpush.msra.mxu0 %v544
    %1334 = vmatpush.msra.mxu0 %v543
    %1335 = vmatpush.msra.mxu0 %v542
    %1336 = vmatpush.msra.mxu0 %v541
    %1337 = vmatpush.msra.mxu0 %v540
    %1338 = vmatpush.msra.mxu0 %v539
    %1339 = vmatpush.msra.mxu0 %v538
    %1340 = vmatpush.msra.mxu0 %v537
    %1341 = vmatmul.f32.gmra.mxu0 %v710
    %v1342 = vpop.f32.mrf.mxu0
    %v1343 = vadd.f32 %v1323, %v1342
    %1344 = vdwg.mxu0
    %1345 = vmatpush.msra.mxu0 %v568
    %1346 = vmatpush.msra.mxu0 %v567
    %1347 = vmatpush.msra.mxu0 %v566
    %1348 = vmatpush.msra.mxu0 %v565
    %1349 = vmatpush.msra.mxu0 %v564
    %1350 = vmatpush.msra.mxu0 %v563
    %1351 = vmatpush.msra.mxu0 %v562
    %1352 = vmatpush.msra.mxu0 %v561
    %1353 = vmatpush.msra.mxu0 %v560
    %1354 = vmatpush.msra.mxu0 %v559
    %1355 = vmatpush.msra.mxu0 %v558
    %1356 = vmatpush.msra.mxu0 %v557
    %1357 = vmatpush.msra.mxu0 %v556
    %1358 = vmatpush.msra.mxu0 %v555
    %1359 = vmatpush.msra.mxu0 %v554
    %1360 = vmatpush.msra.mxu0 %v553
    %1361 = vmatmul.f32.gmra.mxu0 %v711
    %v1362 = vpop.f32.mrf.mxu0
    %v1363 = vadd.f32 %v1343, %v1362
    %1364 = vdwg.mxu0
    %1365 = vmatpush.msra.mxu0 %v584
    %1366 = vmatpush.msra.mxu0 %v583
    %1367 = vmatpush.msra.mxu0 %v582
    %1368 = vmatpush.msra.mxu0 %v581
    %1369 = vmatpush.msra.mxu0 %v580
    %1370 = vmatpush.msra.mxu0 %v579
    %1371 = vmatpush.msra.mxu0 %v578
    %1372 = vmatpush.msra.mxu0 %v577
    %1373 = vmatpush.msra.mxu0 %v576
    %1374 = vmatpush.msra.mxu0 %v575
    %1375 = vmatpush.msra.mxu0 %v574
    %1376 = vmatpush.msra.mxu0 %v573
    %1377 = vmatpush.msra.mxu0 %v572
    %1378 = vmatpush.msra.mxu0 %v571
    %1379 = vmatpush.msra.mxu0 %v570
    %1380 = vmatpush.msra.mxu0 %v569
    %1381 = vmatmul.f32.gmra.mxu0 %v712
    %v1382 = vpop.f32.mrf.mxu0
    %v1383 = vadd.f32 %v1363, %v1382
    %1384 = vdwg.mxu0
    %v1385 = vadd.f32 %v64, %v1383
    %vm1386 = vcmask 254976
    %1387 = vst.msk [vmem:[#allocation2] sm:$0x3] %vm1386, %v1385
    // Predicated region
    $region34: #{tpu_custom_call.1} parent=1 // pred_check
      %p1388 = pneg %p27
    $region35: #{tpu_custom_call.1} parent=1 // pred_check_branch
      %1390 = sbr.rel (%p1388) target = $region37
    $region36: #{tpu_custom_call.1} parent=1 // pred_region
      %v1391 = vld [vmem:[#allocation2] sm:$0x3]
      %1392 = vst.msk [vmem:[#allocation3] sm:$0x3] %vm1386, %v1391
    $region37: #{tpu_custom_call.1} parent=1 // pred_fallthru
      _
    // Predicated region
    $region38: #{tpu_custom_call.1} parent=1 // pred_check
      _
    $region39: #{tpu_custom_call.1} parent=1 // pred_check_branch
      %1394 = sbr.rel (0) target = $region41
    $region40: #{tpu_custom_call.1} parent=1 // pred_region
      %1396 = vsyncadd [#allocation4], 0
      %s1398 = sshll.u32 [#allocation3], 4
      %s1399 = int_to_ptr.vmem [resolvable:$true] %s1398
      %s1400 = sshll.u32 %s7, 4
      %s1401 = int_to_ptr.hbm [resolvable:$true] %s1400
      %1403 = dma.vmem_to_hbm [thread:$0]  %s1399, 32, %s1401, [#allocation4]
    $region41: #{tpu_custom_call.1} parent=1 // pred_fallthru
      _
    // Predicated region
    $region42: #{tpu_custom_call.1} parent=1 // pred_check
      _
    $region43: #{tpu_custom_call.1} parent=1 // pred_check_branch
      %1405 = sbr.rel (0) target = $region45
    $region44: #{tpu_custom_call.1} parent=1 // pred_region
      %1407 = dma.done [#allocation4], 32
    $region45: #{tpu_custom_call.1} parent=1 // pred_fallthru
      _
    %1408 = vsyncpa [#allocation4], 1

</llo_original>
